<compile_context>
chip_gen: v6e
topology: v6e:2x2x1
jax: 0.10.0
libtpu: 0.0.40
codegen_flags: <defaults>
</compile_context>

<pallas_src>
import functools

import jax
import jax.numpy as jnp
from jax.experimental import pallas as pl
from jax.experimental.pallas import tpu as pltpu


# ---------------------------------------------------------------------------
# Fused kernel.  grid = (n_batch_tiles, n_spatial_tiles); weights resident.
# ---------------------------------------------------------------------------
def fused_kernel(patch_ref, w_stem_ref, b_stem_ref, w_ll_ref, b_ll_ref,
                 w1_ref, b1_ref, w2_ref, b2_ref, o_ref, acc_ref,
                 *, tb, s_real, s_pad):
    s = pl.program_id(1)

    @pl.when(s == 0)
    def _init():
        acc_ref[...] = jnp.zeros_like(acc_ref)

    # Stem conv as a lane-dense im2col matmul (BN scale folded into w_stem):
    # (C_STEM, K) @ (K, tile_s) -> (C_STEM, tile_s); tb is a small static int.
    for b in range(tb):
        y = jnp.dot(w_stem_ref[...], patch_ref[b],
                    preferred_element_type=jnp.float32)        # (C_STEM, tile_s)
        y = jnp.maximum(y + b_stem_ref[...], 0.0)              # folded BN bias + ReLU
        # fused global average pool: per-channel running sums in VMEM scratch
        acc_ref[:, b:b + 1] += jnp.sum(y, axis=-1, keepdims=True)

    @pl.when(s == pl.num_programs(1) - 1)
    def _finalize():
        # Spatial zero-pad columns each contributed exactly relu(b_stem);
        # subtract that constant instead of masking every tile.
        corr = float(s_pad - s_real) * jnp.maximum(b_stem_ref[...], 0.0)
        pooled = (acc_ref[...] - corr) * (1.0 / s_real)        # (C_STEM, TB) avgpool_1a
        pooled = pooled.T                                       # (TB, C_STEM) tiny XLU transpose
        # model.dropout(0.6) and head Dropout(0.4): identity at inference
        emb = jnp.dot(pooled.astype(jnp.bfloat16), w_ll_ref[...],
                      preferred_element_type=jnp.float32) + b_ll_ref[...]   # last_linear + last_bn
        h = jnp.dot(emb.astype(jnp.bfloat16), w1_ref[...],
                    preferred_element_type=jnp.float32) + b1_ref[...]       # Linear(512,1024)
        logits = jnp.dot(h.astype(jnp.bfloat16), w2_ref[...],
                         preferred_element_type=jnp.float32) + b2_ref[...]  # Linear(1024,3)->128
        m = jnp.max(logits, axis=-1, keepdims=True)             # Softmax(dim=1)
        e = jnp.exp(logits - m)
        o_ref[0] = e / jnp.sum(e, axis=-1, keepdims=True)       # exact divide (once / batch tile)


# ---------------------------------------------------------------------------
# Wrapper
# ---------------------------------------------------------------------------
def model_out_forward(x, params, *, tile_s=1024):
    """x: (B, 3, H, W) float32 NCHW -> (B, 3) softmax probabilities."""
    B = x.shape[0]
    p = params
    C_STEM = p["w_conv"].shape[1]
    EMB = p["w_ll"].shape[1]
    HID = p["w1"].shape[1]
    NCLS = p["w2"].shape[1]
    NCLS_PAD = 128                       # lane-dense head output block
    assert NCLS <= NCLS_PAD

    # --- im2col (XLA): (B, K, OH, OW); cast early, keep K-major layout (no transpose) ---
    patches = jax.lax.conv_general_dilated_patches(x, (3, 3), (2, 2), "VALID")
    patches = patches.astype(jnp.bfloat16)
    K, OH, OW = patches.shape[1], patches.shape[2], patches.shape[3]
    S = OH * OW
    patches = patches.reshape(B, K, S)

    # spatial tiling: lane axis, multiple of 128, no larger than needed
    tile_s = max(128, (tile_s // 128) * 128)
    tile_s = min(tile_s, pl.cdiv(S, 128) * 128)
    n_s = pl.cdiv(S, tile_s)
    S_pad = n_s * tile_s

    # batch tiling: >=2 batch tiles whenever B>=2 (v7x megacore), M=TB head matmuls
    TB = max(1, min(8, pl.cdiv(B, 2)))
    n_bt = pl.cdiv(B, TB)
    B_pad = n_bt * TB

    patches = jnp.pad(patches, ((0, B_pad - B), (0, 0), (0, S_pad - S)))

    # --- fold eval-mode BatchNorms into weights / biases (eps = 1e-3) ---
    eps = 1e-3
    sc = p["conv_bn_g"] * jax.lax.rsqrt(p["conv_bn_v"] + eps)              # (1, C_STEM)
    w_stem = (p["w_conv"] * sc).T.astype(jnp.bfloat16)                     # (C_STEM, K)
    b_stem = (p["conv_bn_b"] - p["conv_bn_m"] * sc).reshape(C_STEM, 1)     # (C_STEM, 1) f32

    sll = p["bn_g"] * jax.lax.rsqrt(p["bn_v"] + eps)                       # (1, EMB)
    w_ll = (p["w_ll"] * sll).astype(jnp.bfloat16)                          # (C_STEM, EMB)
    b_ll = p["bn_b"] - p["bn_m"] * sll                                     # (1, EMB) f32

    w1 = p["w1"].astype(jnp.bfloat16)
    b1 = p["b1"]
    # pad logits to 128 lanes; padded classes get bias -1e30 so the softmax over
    # the padded block equals the softmax over the real NCLS classes.
    w2 = jnp.pad(p["w2"], ((0, 0), (0, NCLS_PAD - NCLS))).astype(jnp.bfloat16)
    b2 = jnp.pad(p["b2"], ((0, 0), (0, NCLS_PAD - NCLS)), constant_values=-1e30)

    kernel = functools.partial(fused_kernel, tb=TB, s_real=S, s_pad=S_pad)

    flops = (2 * B_pad * S_pad * K * C_STEM
             + B_pad * (2 * C_STEM * EMB + 2 * EMB * HID + 2 * HID * NCLS_PAD))
    bytes_accessed = (patches.size * 2 + w_stem.size * 2 + w_ll.size * 2
                      + w1.size * 2 + w2.size * 2
                      + (b_stem.size + b_ll.size + b1.size + b2.size) * 4
                      + B_pad * NCLS_PAD * 4)

    out = pl.pallas_call(
        kernel,
        out_shape=jax.ShapeDtypeStruct((n_bt, TB, NCLS_PAD), jnp.float32),
        grid_spec=pltpu.PrefetchScalarGridSpec(
            num_scalar_prefetch=0,
            grid=(n_bt, n_s),
            in_specs=[
                pl.BlockSpec((TB, K, tile_s), lambda bt, s: (bt, 0, s)),   # patches (B,K,S)
                pl.BlockSpec((C_STEM, K),     lambda bt, s: (0, 0)),       # w_stem.T (resident)
                pl.BlockSpec((C_STEM, 1),     lambda bt, s: (0, 0)),       # b_stem
                pl.BlockSpec((C_STEM, EMB),   lambda bt, s: (0, 0)),       # w_ll
                pl.BlockSpec((1, EMB),        lambda bt, s: (0, 0)),       # b_ll
                pl.BlockSpec((EMB, HID),      lambda bt, s: (0, 0)),       # w1
                pl.BlockSpec((1, HID),        lambda bt, s: (0, 0)),       # b1
                pl.BlockSpec((HID, NCLS_PAD), lambda bt, s: (0, 0)),       # w2 (padded)
                pl.BlockSpec((1, NCLS_PAD),   lambda bt, s: (0, 0)),       # b2 (padded)
            ],
            out_specs=pl.BlockSpec((1, TB, NCLS_PAD), lambda bt, s: (bt, 0, 0)),
            scratch_shapes=[pltpu.VMEM((C_STEM, TB), jnp.float32)],        # pooled sums
        ),
        compiler_params=pltpu.CompilerParams(
            dimension_semantics=("parallel", "arbitrary"),
            vmem_limit_bytes=32 * 1024 * 1024),
        cost_estimate=pl.CostEstimate(
            flops=flops,
            transcendentals=B_pad * NCLS_PAD,
            bytes_accessed=bytes_accessed),
    )(patches, w_stem, b_stem, w_ll, b_ll, w1, b1, w2, b2)

    return out.reshape(B_pad, NCLS_PAD)[:B, :NCLS]


# ---------------------------------------------------------------------------
# Deterministic synthetic parameters (frozen / eval-mode values)
# ---------------------------------------------------------------------------
def make_params(key, c_in=3, c_stem=32, emb=512, hidden=1024, out_classes=3):
    ks = jax.random.split(key, 8)
    k_conv = c_in * 3 * 3
    return {
        # stem conv: torch weight (32, 3, 3, 3).reshape(32, -1).T -> (K, C_out)
        "w_conv": 0.1 * jax.random.normal(ks[0], (k_conv, c_stem), jnp.float32),
        "conv_bn_g": jnp.ones((1, c_stem), jnp.float32),
        "conv_bn_b": jnp.zeros((1, c_stem), jnp.float32),
        "conv_bn_m": 0.01 * jax.random.normal(ks[1], (1, c_stem), jnp.float32),
        "conv_bn_v": jnp.ones((1, c_stem), jnp.float32),
        # last_linear (bias=False): stored (in, out)
        "w_ll": 0.05 * jax.random.normal(ks[2], (c_stem, emb), jnp.float32),
        "bn_g": jnp.ones((1, emb), jnp.float32),
        "bn_b": jnp.zeros((1, emb), jnp.float32),
        "bn_m": 0.01 * jax.random.normal(ks[3], (1, emb), jnp.float32),
        "bn_v": jnp.ones((1, emb), jnp.float32),
        # ModelOut head (configuration='default', categorical): stored (in, out)
        "w1": 0.05 * jax.random.normal(ks[4], (emb, hidden), jnp.float32),
        "b1": 0.01 * jax.random.normal(ks[5], (1, hidden), jnp.float32),
        "w2": 0.05 * jax.random.normal(ks[6], (hidden, out_classes), jnp.float32),
        "b2": 0.01 * jax.random.normal(ks[7], (1, out_classes), jnp.float32),
    }


if __name__ == "__main__":
    key = jax.random.PRNGKey(0)
    k_x, k_p = jax.random.split(key)

    B, C_IN, H, W = 2, 3, 35, 35          # small but exercises tiling/padding paths
    x = jax.random.normal(k_x, (B, C_IN, H, W), jnp.float32)
    params = make_params(k_p)

    fwd = jax.jit(functools.partial(model_out_forward, params=params))
    probs = fwd(x)
    probs = jax.block_until_ready(probs)

    assert probs.shape == (B, 3)
    assert bool(jnp.all(jnp.isfinite(probs)))
    assert bool(jnp.allclose(jnp.sum(probs, axis=1), 1.0, atol=1e-4))
    print("KERNEL_OK")
</pallas_src>

<mosaic_0001>
module attributes {stable_mosaic.version = 11 : i64} {
  func.func @fused_kernel(%arg0: i32, %arg1: i32, %arg2: memref<1x27x384xbf16, #tpu.memory_space<vmem>>, %arg3: memref<32x27xbf16, #tpu.memory_space<vmem>>, %arg4: memref<32x1xf32, #tpu.memory_space<vmem>>, %arg5: memref<32x512xbf16, #tpu.memory_space<vmem>>, %arg6: memref<1x512xf32, #tpu.memory_space<vmem>>, %arg7: memref<512x1024xbf16, #tpu.memory_space<vmem>>, %arg8: memref<1x1024xf32, #tpu.memory_space<vmem>>, %arg9: memref<1024x128xbf16, #tpu.memory_space<vmem>>, %arg10: memref<1x128xf32, #tpu.memory_space<vmem>>, %arg11: memref<1x1x128xf32, #tpu.memory_space<vmem>>, %arg12: memref<32x1xf32, #tpu.memory_space<vmem>>) attributes {dimension_semantics = [#tpu.dimension_semantics<parallel>, #tpu.dimension_semantics<arbitrary>], iteration_bounds = array<i64: 2, 1>, scalar_prefetch = 0 : i64, scratch_operands = 1 : i64, tpu.core_type = #tpu.core_type<tc>, window_params = [{transform_indices = @transform_0, window_bounds = array<i64: 1, 27, 384>}, {pipeline_mode = #tpu.pipeline_mode<synchronous>, transform_indices = @transform_1, window_bounds = array<i64: 32, 27>}, {pipeline_mode = #tpu.pipeline_mode<synchronous>, transform_indices = @transform_2, window_bounds = array<i64: 32, 1>}, {pipeline_mode = #tpu.pipeline_mode<synchronous>, transform_indices = @transform_3, window_bounds = array<i64: 32, 512>}, {pipeline_mode = #tpu.pipeline_mode<synchronous>, transform_indices = @transform_4, window_bounds = array<i64: 1, 512>}, {pipeline_mode = #tpu.pipeline_mode<synchronous>, transform_indices = @transform_5, window_bounds = array<i64: 512, 1024>}, {pipeline_mode = #tpu.pipeline_mode<synchronous>, transform_indices = @transform_6, window_bounds = array<i64: 1, 1024>}, {pipeline_mode = #tpu.pipeline_mode<synchronous>, transform_indices = @transform_7, window_bounds = array<i64: 1024, 128>}, {pipeline_mode = #tpu.pipeline_mode<synchronous>, transform_indices = @transform_8, window_bounds = array<i64: 1, 128>}, {transform_indices = @transform_9, window_bounds = array<i64: 1, 1, 128>}]} {
    %c0_i32 = arith.constant 0 : i32
    %0 = arith.cmpi eq, %arg1, %c0_i32 : i32
    %1 = arith.extui %0 : i1 to i32
    %c0_i32_0 = arith.constant 0 : i32
    %2 = arith.cmpi ne, %1, %c0_i32_0 : i32
    scf.if %2 {
      %cst_15 = arith.constant 0.000000e+00 : f32
      %20 = vector.broadcast %cst_15 : f32 to vector<32x1xf32>
      %c0_16 = arith.constant 0 : index
      %c0_17 = arith.constant 0 : index
      %21 = vector.load %arg12[%c0_16, %c0_17] : memref<32x1xf32, #tpu.memory_space<vmem>>, vector<32x1xf32>
      tpu.vector_store %arg12[%c0_16, %c0_17], %20 {strides = array<i32>} : memref<32x1xf32, #tpu.memory_space<vmem>>, vector<32x1xf32>,
    } else {
    }
    %c0 = arith.constant 0 : index
    %c0_1 = arith.constant 0 : index
    %3 = vector.load %arg3[%c0, %c0_1] : memref<32x27xbf16, #tpu.memory_space<vmem>>, vector<32x27xbf16>
    %c0_2 = arith.constant 0 : index
    %c0_3 = arith.constant 0 : index
    %c0_4 = arith.constant 0 : index
    %4 = vector.load %arg2[%c0_2, %c0_3, %c0_4] : memref<1x27x384xbf16, #tpu.memory_space<vmem>>, vector<1x27x384xbf16>
    %5 = vector.shape_cast %4 : vector<1x27x384xbf16> to vector<27x384xbf16>
    %cst = arith.constant dense<0.000000e+00> : vector<32x384xf32>
    %6 = tpu.matmul %3, %5, %cst {dimension_numbers = #tpu.dot_dimension_numbers<[1], [0], [0], [1], [0, 0, 1, 1], [], []>} : vector<32x27xbf16>, vector<27x384xbf16>, vector<32x384xf32> -> vector<32x384xf32>
    %c0_5 = arith.constant 0 : index
    %c0_6 = arith.constant 0 : index
    %7 = vector.load %arg4[%c0_5, %c0_6] : memref<32x1xf32, #tpu.memory_space<vmem>>, vector<32x1xf32>
    %8 = vector.broadcast %7 : vector<32x1xf32> to vector<32x384xf32>
    %9 = arith.addf %6, %8 : vector<32x384xf32>
    %cst_7 = arith.constant 0.000000e+00 : f32
    %10 = vector.broadcast %cst_7 : f32 to vector<32x384xf32>
    %11 = arith.maximumf %9, %10 : vector<32x384xf32>
    %c0_8 = arith.constant 0 : index
    %c0_9 = arith.constant 0 : index
    %12 = vector.load %arg12[%c0_8, %c0_9] : memref<32x1xf32, #tpu.memory_space<vmem>>, vector<32x1xf32>
    %cst_10 = arith.constant dense<0.000000e+00> : vector<32xf32>
    %13 = vector.multi_reduction <add>, %11, %cst_10 [1] : vector<32x384xf32> to vector<32xf32>
    %14 = vector.shape_cast %13 : vector<32xf32> to vector<32x1xf32>
    %15 = arith.addf %12, %14 : vector<32x1xf32>
    %c0_11 = arith.constant 0 : index
    %c0_12 = arith.constant 0 : index
    %16 = vector.load %arg12[%c0_11, %c0_12] : memref<32x1xf32, #tpu.memory_space<vmem>>, vector<32x1xf32>
    tpu.vector_store %arg12[%c0_11, %c0_12], %15 {strides = array<i32>} : memref<32x1xf32, #tpu.memory_space<vmem>>, vector<32x1xf32>,
    %c0_i32_13 = arith.constant 0 : i32
    %17 = arith.cmpi eq, %arg1, %c0_i32_13 : i32
    %18 = arith.extui %17 : i1 to i32
    %c0_i32_14 = arith.constant 0 : i32
    %19 = arith.cmpi ne, %18, %c0_i32_14 : i32
    scf.if %19 {
      %c0_15 = arith.constant 0 : index
      %c0_16 = arith.constant 0 : index
      %20 = vector.load %arg4[%c0_15, %c0_16] : memref<32x1xf32, #tpu.memory_space<vmem>>, vector<32x1xf32>
      %cst_17 = arith.constant 0.000000e+00 : f32
      %21 = vector.broadcast %cst_17 : f32 to vector<32x1xf32>
      %22 = arith.maximumf %20, %21 : vector<32x1xf32>
      %cst_18 = arith.constant 9.500000e+01 : f32
      %23 = vector.broadcast %cst_18 : f32 to vector<32x1xf32>
      %24 = arith.mulf %23, %22 : vector<32x1xf32>
      %c0_19 = arith.constant 0 : index
      %c0_20 = arith.constant 0 : index
      %25 = vector.load %arg12[%c0_19, %c0_20] : memref<32x1xf32, #tpu.memory_space<vmem>>, vector<32x1xf32>
      %26 = arith.subf %25, %24 : vector<32x1xf32>
      %cst_21 = arith.constant 0.00346020772 : f32
      %27 = vector.broadcast %cst_21 : f32 to vector<32x1xf32>
      %28 = arith.mulf %26, %27 : vector<32x1xf32>
      %29 = tpu.transpose %28, [1, 0] : vector<32x1xf32> -> vector<1x32xf32>
      %30 = arith.truncf %29 : vector<1x32xf32> to vector<1x32xbf16>
      %c0_22 = arith.constant 0 : index
      %c0_23 = arith.constant 0 : index
      %31 = vector.load %arg5[%c0_22, %c0_23] : memref<32x512xbf16, #tpu.memory_space<vmem>>, vector<32x512xbf16>
      %cst_24 = arith.constant dense<0.000000e+00> : vector<1x512xf32>
      %32 = tpu.matmul %30, %31, %cst_24 {dimension_numbers = #tpu.dot_dimension_numbers<[1], [0], [0], [1], [0, 0, 1, 1], [], []>} : vector<1x32xbf16>, vector<32x512xbf16>, vector<1x512xf32> -> vector<1x512xf32>
      %c0_25 = arith.constant 0 : index
      %c0_26 = arith.constant 0 : index
      %33 = vector.load %arg6[%c0_25, %c0_26] : memref<1x512xf32, #tpu.memory_space<vmem>>, vector<1x512xf32>
      %34 = arith.addf %32, %33 : vector<1x512xf32>
      %35 = arith.truncf %34 : vector<1x512xf32> to vector<1x512xbf16>
      %c0_27 = arith.constant 0 : index
      %c0_28 = arith.constant 0 : index
      %36 = vector.load %arg7[%c0_27, %c0_28] : memref<512x1024xbf16, #tpu.memory_space<vmem>>, vector<512x1024xbf16>
      %cst_29 = arith.constant dense<0.000000e+00> : vector<1x1024xf32>
      %37 = tpu.matmul %35, %36, %cst_29 {dimension_numbers = #tpu.dot_dimension_numbers<[1], [0], [0], [1], [0, 0, 1, 1], [], []>} : vector<1x512xbf16>, vector<512x1024xbf16>, vector<1x1024xf32> -> vector<1x1024xf32>
      %c0_30 = arith.constant 0 : index
      %c0_31 = arith.constant 0 : index
      %38 = vector.load %arg8[%c0_30, %c0_31] : memref<1x1024xf32, #tpu.memory_space<vmem>>, vector<1x1024xf32>
      %39 = arith.addf %37, %38 : vector<1x1024xf32>
      %40 = arith.truncf %39 : vector<1x1024xf32> to vector<1x1024xbf16>
      %c0_32 = arith.constant 0 : index
      %c0_33 = arith.constant 0 : index
      %41 = vector.load %arg9[%c0_32, %c0_33] : memref<1024x128xbf16, #tpu.memory_space<vmem>>, vector<1024x128xbf16>
      %cst_34 = arith.constant dense<0.000000e+00> : vector<1x128xf32>
      %42 = tpu.matmul %40, %41, %cst_34 {dimension_numbers = #tpu.dot_dimension_numbers<[1], [0], [0], [1], [0, 0, 1, 1], [], []>} : vector<1x1024xbf16>, vector<1024x128xbf16>, vector<1x128xf32> -> vector<1x128xf32>
      %c0_35 = arith.constant 0 : index
      %c0_36 = arith.constant 0 : index
      %43 = vector.load %arg10[%c0_35, %c0_36] : memref<1x128xf32, #tpu.memory_space<vmem>>, vector<1x128xf32>
      %44 = arith.addf %42, %43 : vector<1x128xf32>
      %cst_37 = arith.constant dense<0xFF800000> : vector<1xf32>
      %45 = vector.multi_reduction <maximumf>, %44, %cst_37 [1] : vector<1x128xf32> to vector<1xf32>
      %46 = vector.shape_cast %45 : vector<1xf32> to vector<1x1xf32>
      %47 = vector.broadcast %46 : vector<1x1xf32> to vector<1x128xf32>
      %48 = arith.subf %44, %47 : vector<1x128xf32>
      %49 = math.exp %48 : vector<1x128xf32>
      %cst_38 = arith.constant dense<0.000000e+00> : vector<1xf32>
      %50 = vector.multi_reduction <add>, %49, %cst_38 [1] : vector<1x128xf32> to vector<1xf32>
      %51 = vector.shape_cast %50 : vector<1xf32> to vector<1x1xf32>
      %52 = vector.broadcast %51 : vector<1x1xf32> to vector<1x128xf32>
      %53 = arith.divf %49, %52 : vector<1x128xf32>
      %c0_39 = arith.constant 0 : index
      %c0_40 = arith.constant 0 : index
      %c0_41 = arith.constant 0 : index
      %54 = vector.load %arg11[%c0_39, %c0_40, %c0_41] : memref<1x1x128xf32, #tpu.memory_space<vmem>>, vector<1x1x128xf32>
      %55 = vector.shape_cast %54 : vector<1x1x128xf32> to vector<1x128xf32>
      %56 = vector.shape_cast %53 : vector<1x128xf32> to vector<1x1x128xf32>
      tpu.vector_store %arg11[%c0_39, %c0_40, %c0_41], %56 {strides = array<i32>} : memref<1x1x128xf32, #tpu.memory_space<vmem>>, vector<1x1x128xf32>,
    } else {
    }
    return
  }
  func.func @transform_0(%arg0: i32, %arg1: i32) -> (i32, i32, i32) {
    %c0_i32 = arith.constant 0 : i32
    %c0_i32_0 = arith.constant 0 : i32
    return %arg0, %c0_i32, %arg1 : i32, i32, i32
  }
  func.func @transform_1(%arg0: i32, %arg1: i32) -> (i32, i32) {
    %c0_i32 = arith.constant 0 : i32
    %c0_i32_0 = arith.constant 0 : i32
    %c0_i32_1 = arith.constant 0 : i32
    return %c0_i32, %c0_i32_0 : i32, i32
  }
  func.func @transform_2(%arg0: i32, %arg1: i32) -> (i32, i32) {
    %c0_i32 = arith.constant 0 : i32
    %c0_i32_0 = arith.constant 0 : i32
    %c0_i32_1 = arith.constant 0 : i32
    return %c0_i32, %c0_i32_0 : i32, i32
  }
  func.func @transform_3(%arg0: i32, %arg1: i32) -> (i32, i32) {
    %c0_i32 = arith.constant 0 : i32
    %c0_i32_0 = arith.constant 0 : i32
    %c0_i32_1 = arith.constant 0 : i32
    return %c0_i32, %c0_i32_0 : i32, i32
  }
  func.func @transform_4(%arg0: i32, %arg1: i32) -> (i32, i32) {
    %c0_i32 = arith.constant 0 : i32
    %c0_i32_0 = arith.constant 0 : i32
    %c0_i32_1 = arith.constant 0 : i32
    return %c0_i32, %c0_i32_0 : i32, i32
  }
  func.func @transform_5(%arg0: i32, %arg1: i32) -> (i32, i32) {
    %c0_i32 = arith.constant 0 : i32
    %c0_i32_0 = arith.constant 0 : i32
    %c0_i32_1 = arith.constant 0 : i32
    return %c0_i32, %c0_i32_0 : i32, i32
  }
  func.func @transform_6(%arg0: i32, %arg1: i32) -> (i32, i32) {
    %c0_i32 = arith.constant 0 : i32
    %c0_i32_0 = arith.constant 0 : i32
    %c0_i32_1 = arith.constant 0 : i32
    return %c0_i32, %c0_i32_0 : i32, i32
  }
  func.func @transform_7(%arg0: i32, %arg1: i32) -> (i32, i32) {
    %c0_i32 = arith.constant 0 : i32
    %c0_i32_0 = arith.constant 0 : i32
    %c0_i32_1 = arith.constant 0 : i32
    return %c0_i32, %c0_i32_0 : i32, i32
  }
  func.func @transform_8(%arg0: i32, %arg1: i32) -> (i32, i32) {
    %c0_i32 = arith.constant 0 : i32
    %c0_i32_0 = arith.constant 0 : i32
    %c0_i32_1 = arith.constant 0 : i32
    return %c0_i32, %c0_i32_0 : i32, i32
  }
  func.func @transform_9(%arg0: i32, %arg1: i32) -> (i32, i32, i32) {
    %c0_i32 = arith.constant 0 : i32
    %c0_i32_0 = arith.constant 0 : i32
    %c0_i32_1 = arith.constant 0 : i32
    return %arg0, %c0_i32, %c0_i32_0 : i32, i32, i32
  }
}

</mosaic_0001>

<llo_original>
// kernel: model_out_forward.1
$region0: #{model_out_forward.1}
  #allocation0 [shape = 'u32[]', space=smem, size = 0x4, offset = 0x4, fixed_abs, tag = 'smem constant byte address 0x4 - core index']
  #allocation1 [shape = 'u32[144,128]{1,0:T(1,128)}', space=vmem, size = 0x12000, scoped, tag = 'internal scratch']
  #allocation2 [shape = 'f32[32,1]{1,0:T(8,128)}', space=vmem, size = 0x4000, scoped, tag = 'scratch operand']
  %s0 = inlined_call_operand.vmem [shape: bf16[2,27,384], index: 0, kind: input, shape index: {}]
  %s1 = inlined_call_operand.vmem [shape: bf16[32,27], index: 1, kind: input, shape index: {}]
  %s2 = inlined_call_operand.vmem [shape: f32[32,1], index: 2, kind: input, shape index: {}]
  %s3 = inlined_call_operand.vmem [shape: bf16[32,512], index: 3, kind: input, shape index: {}]
  %s4 = inlined_call_operand.vmem [shape: f32[1,512], index: 4, kind: input, shape index: {}]
  %s5 = inlined_call_operand.vmem [shape: bf16[512,1024], index: 5, kind: input, shape index: {}]
  %s6 = inlined_call_operand.vmem [shape: f32[1,1024], index: 6, kind: input, shape index: {}]
  %s7 = inlined_call_operand.vmem [shape: bf16[1024,128], index: 7, kind: input, shape index: {}]
  %s8 = inlined_call_operand.vmem [shape: f32[1,128], index: 8, kind: input, shape index: {}]
  %s9 = inlined_call_operand.hbm [shape: f32[2,1,128], index: 9, kind: output, shape index: {}]
  %s10 = sld [smem:[#allocation0]]
  $region77: #{model_out_forward.1} parent=0
    _
  %s12 = ssub.s32 1, %s10
  %s13 = scalar_select 0, %s12, %s10
  $region1: #{model_out_forward.1} parent=0
    #allocation3 [shape = 'u8[1024]{0}', space=vmem, size = 0x400, scoped, tag = 'output window, operand 0']
    #allocation4 [shape = 's32[2]{0}', space=sflag, size = 0x8, scoped, tag = 'scoped memory for model_out_forward.1']
    %14 = vsyncpa [#allocation4], 0
    %s15 = scalar_lea.sflag [#allocation4], 1
    %16 = vsyncpa %s15, 0
    loop: start=0, step=1, limit=4
    $region2: #{model_out_forward.1} parent=1 // loop_pre_header
      _
    $region3: #{model_out_forward.1} parent=1 // loop_header
      %s18 = sphi 0, %s22
      %p19 = scmp.ge.s32.totalorder %s18, 4
      %s25 = sphi 0, %s37
      %s26 = sphi 0, %s33
      %s27 = sphi 0, %s25
      %s28 = sphi 0, %s26
      %s29 = sphi 0, %s27
      %s30 = sphi 0, %s28
      %s42 = sphi 0, %s44
      %s45 = sphi 0, %s42
      %s46 = sphi 0, %s45
      %s62 = sphi 0, %s46
      %s66 = sphi 0, %s66
      %s68 = sphi 0, %s66
      %s69 = sphi 0, %s68
      %s83 = sphi 0, %s69
      %s87 = sphi 0, %s87
      %s89 = sphi 0, %s87
      %s90 = sphi 0, %s89
      %s104 = sphi 0, %s90
      %s108 = sphi 0, %s108
      %s110 = sphi 0, %s108
      %s111 = sphi 0, %s110
      %s125 = sphi 0, %s111
      %s129 = sphi 0, %s129
      %s131 = sphi 0, %s129
      %s132 = sphi 0, %s131
      %s146 = sphi 0, %s132
      %s150 = sphi 0, %s150
      %s152 = sphi 0, %s150
      %s153 = sphi 0, %s152
      %s167 = sphi 0, %s153
      %s171 = sphi 0, %s171
      %s173 = sphi 0, %s171
      %s174 = sphi 0, %s173
      %s188 = sphi 0, %s174
      %s192 = sphi 0, %s192
      %s194 = sphi 0, %s192
      %s195 = sphi 0, %s194
      %s209 = sphi 0, %s195
      %s213 = sphi 0, %s213
      %s215 = sphi 0, %s213
      %s216 = sphi 0, %s215
      %s230 = sphi 0, %s216
      %s236 = sphi 0, %s238
      %s239 = sphi 0, %s236
      %s240 = sphi 0, %s239
      %s256 = sphi 0, %s240
    $region4: #{model_out_forward.1} parent=1 // loop_header_branch
      %21 = sbr.rel (%p19) target = $region8
    $region5: #{model_out_forward.1} parent=1 // loop_body
      %s23 = ssub.s32 %s18, 1
      %s24 = ssub.s32 %s18, 2
      %s31 = sadd.s32 1, %s26
      %p32 = scmp.ge.s32.totalorder %s31, 1
      %s33 = scalar_select %p32, 0, %s31
      %s34 = sadd.s32 1, %s25
      %s35 = scalar_select %p32, %s34, %s25
      %p36 = scmp.ge.s32.totalorder %s35, 2
      %s37 = scalar_select %p36, 0, %s35
      %s38 = ssub.s32 %s25, %s37
      %s39 = ssub.s32 %s26, %s33
      %s40 = sor.u32 %s38, %s39
      %p41 = scmp.eq.s32.totalorder %s40, 0
      %s43 = sadd.s32 %s42, 1
      %s44 = scalar_select %p41, %s42, %s43
      %p47 = pneg %p41
      %p48 = scmp.eq.s32.totalorder %s18, 1
      %p49 = por %p47, %p48
      %p50 = scmp.ne.s32.totalorder %s42, %s45
      %p51 = scmp.eq.s32.totalorder %s18, 0
      %p52 = por %p50, %p51
      %p53 = scmp.ne.s32.totalorder %s42, %s45
      %p54 = scmp.eq.s32.totalorder %s23, 1
      %p55 = por %p53, %p54
      %p56 = scmp.ne.s32.totalorder %s45, %s46
      %p57 = scmp.eq.s32.totalorder %s23, 0
      %p58 = por %p56, %p57
      %p59 = scmp.ne.s32.totalorder %s45, %s46
      %p60 = scmp.eq.s32.totalorder %s24, 1
      %p61 = por %p59, %p60
      %p63 = scmp.ne.s32.totalorder %s46, %s62
      %p64 = scmp.eq.s32.totalorder %s24, 0
      %p65 = por %p63, %p64
      %s67 = sadd.s32 %s66, 1
      %p70 = scmp.eq.s32.totalorder %s18, 1
      %p71 = scmp.ne.s32.totalorder %s66, %s68
      %p72 = scmp.eq.s32.totalorder %s18, 0
      %p73 = por %p71, %p72
      %p74 = scmp.ne.s32.totalorder %s66, %s68
      %p75 = scmp.eq.s32.totalorder %s23, 1
      %p76 = por %p74, %p75
      %p77 = scmp.ne.s32.totalorder %s68, %s69
      %p78 = scmp.eq.s32.totalorder %s23, 0
      %p79 = por %p77, %p78
      %p80 = scmp.ne.s32.totalorder %s68, %s69
      %p81 = scmp.eq.s32.totalorder %s24, 1
      %p82 = por %p80, %p81
      %p84 = scmp.ne.s32.totalorder %s69, %s83
      %p85 = scmp.eq.s32.totalorder %s24, 0
      %p86 = por %p84, %p85
      %s88 = sadd.s32 %s87, 1
      %p91 = scmp.eq.s32.totalorder %s18, 1
      %p92 = scmp.ne.s32.totalorder %s87, %s89
      %p93 = scmp.eq.s32.totalorder %s18, 0
      %p94 = por %p92, %p93
      %p95 = scmp.ne.s32.totalorder %s87, %s89
      %p96 = scmp.eq.s32.totalorder %s23, 1
      %p97 = por %p95, %p96
      %p98 = scmp.ne.s32.totalorder %s89, %s90
      %p99 = scmp.eq.s32.totalorder %s23, 0
      %p100 = por %p98, %p99
      %p101 = scmp.ne.s32.totalorder %s89, %s90
      %p102 = scmp.eq.s32.totalorder %s24, 1
      %p103 = por %p101, %p102
      %p105 = scmp.ne.s32.totalorder %s90, %s104
      %p106 = scmp.eq.s32.totalorder %s24, 0
      %p107 = por %p105, %p106
      %s109 = sadd.s32 %s108, 1
      %p112 = scmp.eq.s32.totalorder %s18, 1
      %p113 = scmp.ne.s32.totalorder %s108, %s110
      %p114 = scmp.eq.s32.totalorder %s18, 0
      %p115 = por %p113, %p114
      %p116 = scmp.ne.s32.totalorder %s108, %s110
      %p117 = scmp.eq.s32.totalorder %s23, 1
      %p118 = por %p116, %p117
      %p119 = scmp.ne.s32.totalorder %s110, %s111
      %p120 = scmp.eq.s32.totalorder %s23, 0
      %p121 = por %p119, %p120
      %p122 = scmp.ne.s32.totalorder %s110, %s111
      %p123 = scmp.eq.s32.totalorder %s24, 1
      %p124 = por %p122, %p123
      %p126 = scmp.ne.s32.totalorder %s111, %s125
      %p127 = scmp.eq.s32.totalorder %s24, 0
      %p128 = por %p126, %p127
      %s130 = sadd.s32 %s129, 1
      %p133 = scmp.eq.s32.totalorder %s18, 1
      %p134 = scmp.ne.s32.totalorder %s129, %s131
      %p135 = scmp.eq.s32.totalorder %s18, 0
      %p136 = por %p134, %p135
      %p137 = scmp.ne.s32.totalorder %s129, %s131
      %p138 = scmp.eq.s32.totalorder %s23, 1
      %p139 = por %p137, %p138
      %p140 = scmp.ne.s32.totalorder %s131, %s132
      %p141 = scmp.eq.s32.totalorder %s23, 0
      %p142 = por %p140, %p141
      %p143 = scmp.ne.s32.totalorder %s131, %s132
      %p144 = scmp.eq.s32.totalorder %s24, 1
      %p145 = por %p143, %p144
      %p147 = scmp.ne.s32.totalorder %s132, %s146
      %p148 = scmp.eq.s32.totalorder %s24, 0
      %p149 = por %p147, %p148
      %s151 = sadd.s32 %s150, 1
      %p154 = scmp.eq.s32.totalorder %s18, 1
      %p155 = scmp.ne.s32.totalorder %s150, %s152
      %p156 = scmp.eq.s32.totalorder %s18, 0
      %p157 = por %p155, %p156
      %p158 = scmp.ne.s32.totalorder %s150, %s152
      %p159 = scmp.eq.s32.totalorder %s23, 1
      %p160 = por %p158, %p159
      %p161 = scmp.ne.s32.totalorder %s152, %s153
      %p162 = scmp.eq.s32.totalorder %s23, 0
      %p163 = por %p161, %p162
      %p164 = scmp.ne.s32.totalorder %s152, %s153
      %p165 = scmp.eq.s32.totalorder %s24, 1
      %p166 = por %p164, %p165
      %p168 = scmp.ne.s32.totalorder %s153, %s167
      %p169 = scmp.eq.s32.totalorder %s24, 0
      %p170 = por %p168, %p169
      %s172 = sadd.s32 %s171, 1
      %p175 = scmp.eq.s32.totalorder %s18, 1
      %p176 = scmp.ne.s32.totalorder %s171, %s173
      %p177 = scmp.eq.s32.totalorder %s18, 0
      %p178 = por %p176, %p177
      %p179 = scmp.ne.s32.totalorder %s171, %s173
      %p180 = scmp.eq.s32.totalorder %s23, 1
      %p181 = por %p179, %p180
      %p182 = scmp.ne.s32.totalorder %s173, %s174
      %p183 = scmp.eq.s32.totalorder %s23, 0
      %p184 = por %p182, %p183
      %p185 = scmp.ne.s32.totalorder %s173, %s174
      %p186 = scmp.eq.s32.totalorder %s24, 1
      %p187 = por %p185, %p186
      %p189 = scmp.ne.s32.totalorder %s174, %s188
      %p190 = scmp.eq.s32.totalorder %s24, 0
      %p191 = por %p189, %p190
      %s193 = sadd.s32 %s192, 1
      %p196 = scmp.eq.s32.totalorder %s18, 1
      %p197 = scmp.ne.s32.totalorder %s192, %s194
      %p198 = scmp.eq.s32.totalorder %s18, 0
      %p199 = por %p197, %p198
      %p200 = scmp.ne.s32.totalorder %s192, %s194
      %p201 = scmp.eq.s32.totalorder %s23, 1
      %p202 = por %p200, %p201
      %p203 = scmp.ne.s32.totalorder %s194, %s195
      %p204 = scmp.eq.s32.totalorder %s23, 0
      %p205 = por %p203, %p204
      %p206 = scmp.ne.s32.totalorder %s194, %s195
      %p207 = scmp.eq.s32.totalorder %s24, 1
      %p208 = por %p206, %p207
      %p210 = scmp.ne.s32.totalorder %s195, %s209
      %p211 = scmp.eq.s32.totalorder %s24, 0
      %p212 = por %p210, %p211
      %s214 = sadd.s32 %s213, 1
      %p217 = scmp.eq.s32.totalorder %s18, 1
      %p218 = scmp.ne.s32.totalorder %s213, %s215
      %p219 = scmp.eq.s32.totalorder %s18, 0
      %p220 = por %p218, %p219
      %p221 = scmp.ne.s32.totalorder %s213, %s215
      %p222 = scmp.eq.s32.totalorder %s23, 1
      %p223 = por %p221, %p222
      %p224 = scmp.ne.s32.totalorder %s215, %s216
      %p225 = scmp.eq.s32.totalorder %s23, 0
      %p226 = por %p224, %p225
      %p227 = scmp.ne.s32.totalorder %s215, %s216
      %p228 = scmp.eq.s32.totalorder %s24, 1
      %p229 = por %p227, %p228
      %p231 = scmp.ne.s32.totalorder %s216, %s230
      %p232 = scmp.eq.s32.totalorder %s24, 0
      %p233 = por %p231, %p232
      %s234 = ssub.s32 %s25, %s37
      %p235 = scmp.eq.s32.totalorder %s234, 0
      %s237 = sadd.s32 %s236, 1
      %s238 = scalar_select %p235, %s236, %s237
      %p241 = pneg %p235
      %p242 = scmp.eq.s32.totalorder %s18, 1
      %p243 = por %p241, %p242
      %p244 = scmp.ne.s32.totalorder %s236, %s239
      %p245 = scmp.eq.s32.totalorder %s18, 0
      %p246 = por %p244, %p245
      %p247 = scmp.ne.s32.totalorder %s236, %s239
      %p248 = scmp.eq.s32.totalorder %s23, 1
      %p249 = por %p247, %p248
      %p250 = scmp.ne.s32.totalorder %s239, %s240
      %p251 = scmp.eq.s32.totalorder %s23, 0
      %p252 = por %p250, %p251
      %p253 = scmp.ne.s32.totalorder %s239, %s240
      %p254 = scmp.eq.s32.totalorder %s24, 1
      %p255 = por %p253, %p254
      %p257 = scmp.ne.s32.totalorder %s240, %s256
      %p258 = scmp.eq.s32.totalorder %s24, 0
      %p259 = por %p257, %p258
      %p260 = scmp.le.s32.totalorder 1, %s18
      %p261 = scmp.lt.s32.totalorder %s18, 3
      %p262 = pnand %p260, %p261
      %p263 = pneg %p262
      // Predicated region
      $region9: #{model_out_forward.1} parent=5 // pred_check
        _
      $region10: #{model_out_forward.1} parent=5 // pred_check_branch
        %265 = sbr.rel (%p262) target = $region12
      $region11: #{model_out_forward.1} parent=5 // pred_region
        %s266 = ssub.s32 %s18, 1
        // Predicated region
        $region13: #{model_out_forward.1} parent=11 // pred_check
          %p267 = pneg %p79
        $region14: #{model_out_forward.1} parent=11 // pred_check_branch
          %269 = sbr.rel (%p267) target = $region16
        $region15: #{model_out_forward.1} parent=11 // pred_region
          _
        $region16: #{model_out_forward.1} parent=11 // pred_fallthru
          _
        // Predicated region
        $region17: #{model_out_forward.1} parent=11 // pred_check
          %p270 = pneg %p100
        $region18: #{model_out_forward.1} parent=11 // pred_check_branch
          %272 = sbr.rel (%p270) target = $region20
        $region19: #{model_out_forward.1} parent=11 // pred_region
          _
        $region20: #{model_out_forward.1} parent=11 // pred_fallthru
          _
        // Predicated region
        $region21: #{model_out_forward.1} parent=11 // pred_check
          %p273 = pneg %p121
        $region22: #{model_out_forward.1} parent=11 // pred_check_branch
          %275 = sbr.rel (%p273) target = $region24
        $region23: #{model_out_forward.1} parent=11 // pred_region
          _
        $region24: #{model_out_forward.1} parent=11 // pred_fallthru
          _
        // Predicated region
        $region25: #{model_out_forward.1} parent=11 // pred_check
          %p276 = pneg %p142
        $region26: #{model_out_forward.1} parent=11 // pred_check_branch
          %278 = sbr.rel (%p276) target = $region28
        $region27: #{model_out_forward.1} parent=11 // pred_region
          _
        $region28: #{model_out_forward.1} parent=11 // pred_fallthru
          _
        // Predicated region
        $region29: #{model_out_forward.1} parent=11 // pred_check
          %p279 = pneg %p163
        $region30: #{model_out_forward.1} parent=11 // pred_check_branch
          %281 = sbr.rel (%p279) target = $region32
        $region31: #{model_out_forward.1} parent=11 // pred_region
          _
        $region32: #{model_out_forward.1} parent=11 // pred_fallthru
          _
        // Predicated region
        $region33: #{model_out_forward.1} parent=11 // pred_check
          %p282 = pneg %p184
        $region34: #{model_out_forward.1} parent=11 // pred_check_branch
          %284 = sbr.rel (%p282) target = $region36
        $region35: #{model_out_forward.1} parent=11 // pred_region
          _
        $region36: #{model_out_forward.1} parent=11 // pred_fallthru
          _
        // Predicated region
        $region37: #{model_out_forward.1} parent=11 // pred_check
          %p285 = pneg %p205
        $region38: #{model_out_forward.1} parent=11 // pred_check_branch
          %287 = sbr.rel (%p285) target = $region40
        $region39: #{model_out_forward.1} parent=11 // pred_region
          _
        $region40: #{model_out_forward.1} parent=11 // pred_fallthru
          _
        // Predicated region
        $region41: #{model_out_forward.1} parent=11 // pred_check
          %p288 = pneg %p226
        $region42: #{model_out_forward.1} parent=11 // pred_check_branch
          %290 = sbr.rel (%p288) target = $region44
        $region43: #{model_out_forward.1} parent=11 // pred_region
          _
        $region44: #{model_out_forward.1} parent=11 // pred_fallthru
          _
      $region12: #{model_out_forward.1} parent=5 // pred_fallthru
        _
      %p291 = scmp.lt.s32.totalorder %s18, 2
      // Predicated region
      $region45: #{model_out_forward.1} parent=5 // pred_check
        %p292 = pneg %p291
      $region46: #{model_out_forward.1} parent=5 // pred_check_branch
        %294 = sbr.rel (%p292) target = $region48
      $region47: #{model_out_forward.1} parent=5 // pred_region
        // Predicated region
        $region49: #{model_out_forward.1} parent=47 // pred_check
          %p295 = pneg %p52
        $region50: #{model_out_forward.1} parent=47 // pred_check_branch
          %297 = sbr.rel (%p295) target = $region52
        $region51: #{model_out_forward.1} parent=47 // pred_region
          %s298 = smul.u32 3, %s26
          %p299 = scmp.lt.s32.totalorder %s25, 1
          %s300 = scalar_select %p299, %s25, 1
          %p301 = scmp.lt.s32.totalorder %s298, 2
          %s302 = scalar_select %p301, %s298, 2
          %s303 = smul.addr %s300, 12
          %s304 = sadd.s32 %s302, %s303
          %s305 = smul.addr %s304, 4
          %s306 = scalar_lea.vmem %s0, %s305
          %s307 = smul.u32 3, %s26
        $region52: #{model_out_forward.1} parent=47 // pred_fallthru
          _
      $region48: #{model_out_forward.1} parent=5 // pred_fallthru
        _
      %p308 = scmp.le.s32.totalorder 1, %s18
      %p309 = scmp.lt.s32.totalorder %s18, 3
      %p310 = pnand %p308, %p309
      %p311 = pneg %p310
      // Predicated region
      $region53: #{model_out_forward.1} parent=5 // pred_check
        _
      $region54: #{model_out_forward.1} parent=5 // pred_check_branch
        %313 = sbr.rel (%p310) target = $region56
      $region55: #{model_out_forward.1} parent=5 // pred_region
        %s314 = ssub.s32 %s18, 1
        %s315 = smul.u32 3, %s28
        %p316 = scmp.lt.s32.totalorder %s27, 1
        %s317 = scalar_select %p316, %s27, 1
        %p318 = scmp.lt.s32.totalorder %s315, 2
        %s319 = scalar_select %p318, %s315, 2
        %s320 = smul.addr %s317, 12
        %s321 = sadd.s32 %s319, %s320
        %s322 = smul.addr %s321, 4
        %s323 = scalar_lea.vmem %s0, %s322
        %p324 = pneg %p58
        %p325 = pneg %p55
        %p326 = pneg %p79
        %p327 = pneg %p76
        %p328 = pneg %p100
        %p329 = pneg %p97
        %p330 = pneg %p121
        %p331 = pneg %p118
        %p332 = pneg %p142
        %p333 = pneg %p139
        %p334 = pneg %p163
        %p335 = pneg %p160
        %p336 = pneg %p184
        %p337 = pneg %p181
        %p338 = pneg %p205
        %p339 = pneg %p202
        %p340 = pneg %p226
        %p341 = pneg %p223
        %p342 = pneg %p252
        %p343 = pneg %p249
        %s344 = sand.u32 %s239, 1
        %s345 = scalar_lea.sflag [#allocation4], %s344
        %s346 = sand.u32 %s239, 1
        %s347 = scalar_lea.vmem [#allocation3], %s346
        %s348 = smul.u32 3, %s28
        %p349 = scmp.lt.s32.totalorder %s27, 1
        %s350 = scalar_select %p349, %s27, 1
        %p351 = scmp.lt.s32.totalorder %s348, 2
        %s352 = scalar_select %p351, %s348, 2
        %s353 = smul.addr %s350, 12
        %s354 = sadd.s32 %s352, %s353
        %s355 = smul.addr %s354, 4
        %s356 = scalar_lea.vmem %s0, %s355
        %s357 = smul.u32 3, %s28
        %p359 = scmp.eq.s32.totalorder %s28, 0
        // Predicated region
        $region57: #{model_out_forward.1} parent=55 // pred_check
          %p360 = pneg %p359
        $region58: #{model_out_forward.1} parent=55 // pred_check_branch
          %362 = sbr.rel (%p360) target = $region60
        $region59: #{model_out_forward.1} parent=55 // pred_region
          %vm363 = vcmask 7168
          %364 = vst.msk [vmem:[#allocation2] sm:$0xff] %vm363, 0.0
          %365 = vst.msk [vmem:[#allocation2 + $0x8] sm:$0xff] %vm363, 0.0
          %366 = vst.msk [vmem:[#allocation2 + $0x10] sm:$0xff] %vm363, 0.0
          %367 = vst.msk [vmem:[#allocation2 + $0x18] sm:$0xff] %vm363, 0.0
        $region60: #{model_out_forward.1} parent=55 // pred_fallthru
          _
        %v368 = vld [vmem:[%s1] sm:$0xf]
        %v369 = vld [vmem:[%s1 + $0x4] sm:$0xf]
        %v370 = vld [vmem:[%s1 + $0x8] sm:$0xf]
        %v371 = vld [vmem:[%s1 + $0xc] sm:$0xf]
        %v372 = vld [vmem:[%s356] sm:$0xff]
        %v373 = vld [vmem:[%s356 + $0x8] sm:$0xf]
        %v374 = vld [vmem:[%s356 + $0xc] sm:$0xff]
        %v375 = vld [vmem:[%s356 + $0x14] sm:$0xf]
        %v376 = vld [vmem:[%s356 + $0x18] sm:$0xff]
        %v377 = vld [vmem:[%s356 + $0x20] sm:$0xf]
        %v378 = vld [vmem:[%s356 + $0x24] sm:$0x33]
        %v379 = vld [vmem:[%s356 + $0x2c] sm:$0x3]
        %v380 = vld [vmem:[%s2] sm:$0xff]
        %v381 = vld [vmem:[%s2 + $0x8] sm:$0xff]
        %v382 = vld [vmem:[%s2 + $0x10] sm:$0xff]
        %v383 = vld [vmem:[%s2 + $0x18] sm:$0xff]
        %385 = vset.pattern.permute.xlu0 0
        %386 = vperm.xlu0 %385, %v380
        %v387 = vpop.permute.xlu0 %386
        %390 = vset.pattern.permute.xlu0 0
        %391 = vperm.xlu0 %390, %v381
        %v392 = vpop.permute.xlu0 %391
        %395 = vset.pattern.permute.xlu0 0
        %396 = vperm.xlu0 %395, %v382
        %v397 = vpop.permute.xlu0 %396
        %400 = vset.pattern.permute.xlu0 0
        %401 = vperm.xlu0 %400, %v383
        %v402 = vpop.permute.xlu0 %401
        %v408 = vunpack.c.l.b16 %v368
        %v409 = vunpack.c.l.b16 %v369
        %v410 = vunpack.c.l.b16 %v370
        %v411 = vunpack.c.l.b16 %v371
        %v412 = vpack.c.b16 %v409, %v408
        %v413 = vpack.c.b16 %v411, %v410
        %v422 = vunpack.c.l.b16 %v372
        %v423 = vunpack.c.h.b16 %v372
        %v424 = vunpack.c.l.b16 %v373
        %v425 = vunpack.c.l.b16 %v374
        %v426 = vunpack.c.h.b16 %v374
        %v427 = vunpack.c.l.b16 %v375
        %v428 = vunpack.c.l.b16 %v376
        %v429 = vunpack.c.h.b16 %v376
        %v430 = vunpack.c.l.b16 %v377
        %v431 = vunpack.c.l.b16 %v378
        %v432 = vunpack.c.h.b16 %v378
        %v433 = vunpack.c.l.b16 %v379
        %v434 = vpack.c.b16 %v425, %v422
        %v435 = vpack.c.b16 %v426, %v423
        %v436 = vpack.c.b16 %v427, %v424
        %v437 = vpack.c.b16 %v431, %v428
        %v438 = vpack.c.b16 %v432, %v429
        %v439 = vpack.c.b16 %v433, %v430
        %vm443 = vcmask 220160
        %v445 = vsel %vm443, %v412, 0
        %v448 = vsel %vm443, %v413, 0
        %vm450 = vcmask 1044480
        %vm451 = vcmask 1045504
        %v452 = vsel %vm450, 4294967295, 65535
        %v453 = vsel %vm451, %v452, 0
        %v455 = vand.u32 %v437, %v453
        %v458 = vand.u32 %v438, %v453
        %v461 = vand.u32 %v439, %v453
        %463 = vmatprep.subr.bf16.mxu0 0
        %464 = vmatpush1.bf16.msra.mxu0 0
        %465 = vmatprep.subr.bf16.mxu0 0
        %466 = vmatpush1.bf16.msra.mxu0 0
        %467 = vmatprep.subr.bf16.mxu0 0
        %468 = vmatpush1.bf16.msra.mxu0 0
        %469 = vmatprep.subr.bf16.mxu0 0
        %470 = vmatpush1.bf16.msra.mxu0 0
        %471 = vmatprep.subr.bf16.mxu0 0
        %472 = vmatpush1.bf16.msra.mxu0 0
        %473 = vmatprep.subr.bf16.mxu0 0
        %474 = vmatpush1.bf16.msra.mxu0 0
        %475 = vmatprep.subr.bf16.mxu0 %v458
        %476 = vmatpush1.bf16.msra.mxu0 %v455
        %477 = vmatprep.subr.bf16.mxu0 %v435
        %478 = vmatpush1.bf16.msra.mxu0 %v434
        %479 = vmatprep.subr.bf16.mxu0 0
        %480 = vmatpush2.bf16.msra.mxu0 0
        %481 = vmatprep.subr.bf16.mxu0 0
        %482 = vmatpush2.bf16.msra.mxu0 0
        %483 = vmatprep.subr.bf16.mxu0 0
        %484 = vmatpush2.bf16.msra.mxu0 0
        %485 = vmatprep.subr.bf16.mxu0 0
        %486 = vmatpush2.bf16.msra.mxu0 0
        %487 = vmatprep.subr.bf16.mxu0 0
        %488 = vmatpush2.bf16.msra.mxu0 0
        %489 = vmatprep.subr.bf16.mxu0 0
        %490 = vmatpush2.bf16.msra.mxu0 0
        %491 = vmatprep.subr.bf16.mxu0 0
        %492 = vmatpush2.bf16.msra.mxu0 0
        %493 = vmatprep.subr.bf16.mxu0 0
        %494 = vmatpush2.bf16.msra.mxu0 0
        %495 = vmatprep.mubr.bf16.mxu0 0
        %496 = vmatmul.mubr.bf16.gmra.mxu0 %v445
        %v497 = vpop.f32.mrf.mxu0
        %v498 = vadd.f32 %v387, %v497
        %v499 = vpop.f32.mrf.mxu0
        %v500 = vadd.f32 %v387, %v499
        %v501 = vpop.f32.mrf.mxu0
        %v502 = vadd.f32 %v392, %v501
        %v503 = vpop.f32.mrf.mxu0
        %v504 = vadd.f32 %v392, %v503
        %505 = vmatprep.mubr.bf16.mxu0 0
        %506 = vmatmul.mubr.bf16.gmra.mxu0 %v448
        %v507 = vpop.f32.mrf.mxu0
        %v508 = vadd.f32 %v397, %v507
        %v509 = vpop.f32.mrf.mxu0
        %v510 = vadd.f32 %v397, %v509
        %v511 = vpop.f32.mrf.mxu0
        %v512 = vadd.f32 %v402, %v511
        %v513 = vpop.f32.mrf.mxu0
        %v514 = vadd.f32 %v402, %v513
        %515 = vdwg.mxu0
        %516 = vmatprep.subr.bf16.mxu0 0
        %517 = vmatpush1.bf16.msra.mxu0 0
        %518 = vmatprep.subr.bf16.mxu0 0
        %519 = vmatpush1.bf16.msra.mxu0 0
        %520 = vmatprep.subr.bf16.mxu0 0
        %521 = vmatpush1.bf16.msra.mxu0 0
        %522 = vmatprep.subr.bf16.mxu0 0
        %523 = vmatpush1.bf16.msra.mxu0 0
        %524 = vmatprep.subr.bf16.mxu0 0
        %525 = vmatpush1.bf16.msra.mxu0 0
        %526 = vmatprep.subr.bf16.mxu0 0
        %527 = vmatpush1.bf16.msra.mxu0 0
        %528 = vmatprep.subr.bf16.mxu0 0
        %529 = vmatpush1.bf16.msra.mxu0 %v461
        %530 = vmatprep.subr.bf16.mxu0 0
        %531 = vmatpush1.bf16.msra.mxu0 %v436
        %532 = vmatprep.subr.bf16.mxu0 0
        %533 = vmatpush2.bf16.msra.mxu0 0
        %534 = vmatprep.subr.bf16.mxu0 0
        %535 = vmatpush2.bf16.msra.mxu0 0
        %536 = vmatprep.subr.bf16.mxu0 0
        %537 = vmatpush2.bf16.msra.mxu0 0
        %538 = vmatprep.subr.bf16.mxu0 0
        %539 = vmatpush2.bf16.msra.mxu0 0
        %540 = vmatprep.subr.bf16.mxu0 0
        %541 = vmatpush2.bf16.msra.mxu0 0
        %542 = vmatprep.subr.bf16.mxu0 0
        %543 = vmatpush2.bf16.msra.mxu0 0
        %544 = vmatprep.subr.bf16.mxu0 0
        %545 = vmatpush2.bf16.msra.mxu0 0
        %546 = vmatprep.subr.bf16.mxu0 0
        %547 = vmatpush2.bf16.msra.mxu0 0
        %548 = vmatprep.mubr.bf16.mxu0 0
        %549 = vmatmul.mubr.bf16.gmra.mxu0 %v445
        %v550 = vpop.f32.mrf.mxu0
        %v551 = vadd.f32 %v387, %v550
        %v552 = vpop.f32.mrf.mxu0
        %v553 = vpop.f32.mrf.mxu0
        %v554 = vadd.f32 %v392, %v553
        %v555 = vpop.f32.mrf.mxu0
        %556 = vmatprep.mubr.bf16.mxu0 0
        %557 = vmatmul.mubr.bf16.gmra.mxu0 %v448
        %v558 = vpop.f32.mrf.mxu0
        %v559 = vadd.f32 %v397, %v558
        %v560 = vpop.f32.mrf.mxu0
        %v561 = vpop.f32.mrf.mxu0
        %v562 = vadd.f32 %v402, %v561
        %v563 = vpop.f32.mrf.mxu0
        %564 = vdwg.mxu0
        %v565 = vmax.f32 %v498, 0.0
        %v566 = vmax.f32 %v500, 0.0
        %v567 = vmax.f32 %v551, 0.0
        %v568 = vmax.f32 %v502, 0.0
        %v569 = vmax.f32 %v504, 0.0
        %v570 = vmax.f32 %v554, 0.0
        %v571 = vmax.f32 %v508, 0.0
        %v572 = vmax.f32 %v510, 0.0
        %v573 = vmax.f32 %v559, 0.0
        %v574 = vmax.f32 %v512, 0.0
        %v575 = vmax.f32 %v514, 0.0
        %v576 = vmax.f32 %v562, 0.0
        %v577 = vld [vmem:[#allocation2] sm:$0xff]
        %v578 = vld [vmem:[#allocation2 + $0x8] sm:$0xff]
        %v579 = vld [vmem:[#allocation2 + $0x10] sm:$0xff]
        %v580 = vld [vmem:[#allocation2 + $0x18] sm:$0xff]
        %v581 = vadd.f32 %v565, %v566
        %v582 = vadd.f32 %v581, %v567
        %583 = vadd.xlane.f32.xlu0 %v582
        %v584 = vpop.xlane.xlu0 %583
        %v585 = vadd.f32 %v568, %v569
        %v586 = vadd.f32 %v585, %v570
        %587 = vadd.xlane.f32.xlu0 %v586
        %v588 = vpop.xlane.xlu0 %587
        %v589 = vadd.f32 %v571, %v572
        %v590 = vadd.f32 %v589, %v573
        %591 = vadd.xlane.f32.xlu0 %v590
        %v592 = vpop.xlane.xlu0 %591
        %v593 = vadd.f32 %v574, %v575
        %v594 = vadd.f32 %v593, %v576
        %595 = vadd.xlane.f32.xlu0 %v594
        %v596 = vpop.xlane.xlu0 %595
        %v597 = vadd.f32 %v577, %v584
        %v598 = vadd.f32 %v578, %v588
        %v599 = vadd.f32 %v579, %v592
        %v600 = vadd.f32 %v580, %v596
        %vm601 = vcmask 7168
        %602 = vst.msk [vmem:[#allocation2] sm:$0xff] %vm601, %v597
        %603 = vst.msk [vmem:[#allocation2 + $0x8] sm:$0xff] %vm601, %v598
        %604 = vst.msk [vmem:[#allocation2 + $0x10] sm:$0xff] %vm601, %v599
        %605 = vst.msk [vmem:[#allocation2 + $0x18] sm:$0xff] %vm601, %v600
        // Predicated region
        $region61: #{model_out_forward.1} parent=55 // pred_check
          %p606 = pneg %p359
        $region62: #{model_out_forward.1} parent=55 // pred_check_branch
          %608 = sbr.rel (%p606) target = $region64
        $region63: #{model_out_forward.1} parent=55 // pred_region
          %v609 = vld [vmem:[%s2] sm:$0xff]
          %v610 = vld [vmem:[%s2 + $0x8] sm:$0xff]
          %v611 = vld [vmem:[%s2 + $0x10] sm:$0xff]
          %v612 = vld [vmem:[%s2 + $0x18] sm:$0xff]
          %v613 = vmax.f32 %v609, 0.0
          %v614 = vmax.f32 %v610, 0.0
          %v615 = vmax.f32 %v611, 0.0
          %v616 = vmax.f32 %v612, 0.0
          %v617 = vmul.f32 %v613, 95.0
          %v618 = vmul.f32 %v614, 95.0
          %v619 = vmul.f32 %v615, 95.0
          %v620 = vmul.f32 %v616, 95.0
          %v621 = vld [vmem:[#allocation2] sm:$0xff]
          %v622 = vld [vmem:[#allocation2 + $0x8] sm:$0xff]
          %v623 = vld [vmem:[#allocation2 + $0x10] sm:$0xff]
          %v624 = vld [vmem:[#allocation2 + $0x18] sm:$0xff]
          %v625 = vsub.f32 %v621, %v617
          %v626 = vsub.f32 %v622, %v618
          %v627 = vsub.f32 %v623, %v619
          %v628 = vsub.f32 %v624, %v620
          %v629 = vmul.f32 %v625, 0.0034602077
          %v630 = vmul.f32 %v626, 0.0034602077
          %v631 = vmul.f32 %v627, 0.0034602077
          %v632 = vmul.f32 %v628, 0.0034602077
          %633 = vxpose.xlu0.b32.start [1/16] %v629, 128
          %634 = vxpose.xlu0.b32.cont [2/16] %v630, 128
          %635 = vxpose.xlu0.b32.cont [3/16] %v631, 128
          %636 = vxpose.xlu0.b32.cont [4/16] %v632, 128
          %637 = vxpose.xlu0.b32.cont [5/16] 0.0, 128
          %638 = vxpose.xlu0.b32.cont [6/16] 0.0, 128
          %639 = vxpose.xlu0.b32.cont [7/16] 0.0, 128
          %640 = vxpose.xlu0.b32.cont [8/16] 0.0, 128
          %641 = vxpose.xlu0.b32.cont [9/16] 0.0, 128
          %642 = vxpose.xlu0.b32.cont [10/16] 0.0, 128
          %643 = vxpose.xlu0.b32.cont [11/16] 0.0, 128
          %644 = vxpose.xlu0.b32.cont [12/16] 0.0, 128
          %645 = vxpose.xlu0.b32.cont [13/16] 0.0, 128
          %646 = vxpose.xlu0.b32.cont [14/16] 0.0, 128
          %647 = vxpose.xlu0.b32.cont [15/16] 0.0, 128
          %648 = vxpose.xlu0.b32.end [16/16] 0.0, 128
          %v649 = vpop.trf.xlu0
          %v650 = vpop.trf.xlu0
          %v651 = vpop.trf.xlu0
          %v652 = vpop.trf.xlu0
          %v653 = vpop.trf.xlu0
          %v654 = vpop.trf.xlu0
          %v655 = vpop.trf.xlu0
          %v656 = vpop.trf.xlu0
          %v657 = vpop.trf.xlu0
          %v658 = vpop.trf.xlu0
          %v659 = vpop.trf.xlu0
          %v660 = vpop.trf.xlu0
          %v661 = vpop.trf.xlu0
          %v662 = vpop.trf.xlu0
          %v663 = vpop.trf.xlu0
          %v664 = vpop.trf.xlu0
          %v665 = vpack.c.bf16 %v649, %v649
          %v666 = vld [vmem:[%s3] sm:$0xff]
          %v667 = vld [vmem:[%s3 + $0x8] sm:$0xff]
          %v668 = vld [vmem:[%s3 + $0x10] sm:$0xff]
          %v669 = vld [vmem:[%s3 + $0x18] sm:$0xff]
          %v670 = vld [vmem:[%s3 + $0x20] sm:$0xff]
          %v671 = vld [vmem:[%s3 + $0x28] sm:$0xff]
          %v672 = vld [vmem:[%s3 + $0x30] sm:$0xff]
          %v673 = vld [vmem:[%s3 + $0x38] sm:$0xff]
          %v674 = vld [vmem:[%s4] sm:$0xf]
          %v683 = vunpack.c.l.b16 %v666
          %v684 = vunpack.c.h.b16 %v666
          %v685 = vunpack.c.l.b16 %v667
          %v686 = vunpack.c.h.b16 %v667
          %v687 = vunpack.c.l.b16 %v668
          %v688 = vunpack.c.h.b16 %v668
          %v689 = vunpack.c.l.b16 %v669
          %v690 = vunpack.c.h.b16 %v669
          %v691 = vunpack.c.l.b16 %v670
          %v692 = vunpack.c.h.b16 %v670
          %v693 = vunpack.c.l.b16 %v671
          %v694 = vunpack.c.h.b16 %v671
          %v695 = vunpack.c.l.b16 %v672
          %v696 = vunpack.c.h.b16 %v672
          %v697 = vunpack.c.l.b16 %v673
          %v698 = vunpack.c.h.b16 %v673
          %v699 = vpack.c.b16 %v687, %v683
          %v700 = vpack.c.b16 %v688, %v684
          %v701 = vpack.c.b16 %v689, %v685
          %v702 = vpack.c.b16 %v690, %v686
          %v703 = vpack.c.b16 %v695, %v691
          %v704 = vpack.c.b16 %v696, %v692
          %v705 = vpack.c.b16 %v697, %v693
          %v706 = vpack.c.b16 %v698, %v694
          %v716 = vlaneseq
          %v717 = vshrl.u32 %v716, 7
          %v718 = vsub.s32 0, %v717
          %v719 = vrot.slane %v674, %v718
          %v720 = vlaneseq
          %v721 = vshrl.u32 %v720, 7
          %v722 = vsub.s32 1, %v721
          %v723 = vrot.slane %v674, %v722
          %v724 = vlaneseq
          %v725 = vshrl.u32 %v724, 7
          %v726 = vsub.s32 2, %v725
          %v727 = vrot.slane %v674, %v726
          %v728 = vlaneseq
          %v729 = vshrl.u32 %v728, 7
          %v730 = vsub.s32 3, %v729
          %v731 = vrot.slane %v674, %v730
          %vm736 = vcmask 261120
          %v738 = vsel %vm736, %v665, 0
          %740 = vmatprep.subr.bf16.mxu0 0
          %741 = vmatpush1.bf16.msra.mxu0 0
          %742 = vmatprep.subr.bf16.mxu0 0
          %743 = vmatpush1.bf16.msra.mxu0 0
          %744 = vmatprep.subr.bf16.mxu0 0
          %745 = vmatpush1.bf16.msra.mxu0 0
          %746 = vmatprep.subr.bf16.mxu0 0
          %747 = vmatpush1.bf16.msra.mxu0 0
          %748 = vmatprep.subr.bf16.mxu0 0
          %749 = vmatpush1.bf16.msra.mxu0 0
          %750 = vmatprep.subr.bf16.mxu0 0
          %751 = vmatpush1.bf16.msra.mxu0 0
          %752 = vmatprep.subr.bf16.mxu0 %v704
          %753 = vmatpush1.bf16.msra.mxu0 %v703
          %754 = vmatprep.subr.bf16.mxu0 %v700
          %755 = vmatpush1.bf16.msra.mxu0 %v699
          %756 = vmatprep.subr.bf16.mxu0 0
          %757 = vmatpush2.bf16.msra.mxu0 0
          %758 = vmatprep.subr.bf16.mxu0 0
          %759 = vmatpush2.bf16.msra.mxu0 0
          %760 = vmatprep.subr.bf16.mxu0 0
          %761 = vmatpush2.bf16.msra.mxu0 0
          %762 = vmatprep.subr.bf16.mxu0 0
          %763 = vmatpush2.bf16.msra.mxu0 0
          %764 = vmatprep.subr.bf16.mxu0 0
          %765 = vmatpush2.bf16.msra.mxu0 0
          %766 = vmatprep.subr.bf16.mxu0 0
          %767 = vmatpush2.bf16.msra.mxu0 0
          %768 = vmatprep.subr.bf16.mxu0 0
          %769 = vmatpush2.bf16.msra.mxu0 0
          %770 = vmatprep.subr.bf16.mxu0 0
          %771 = vmatpush2.bf16.msra.mxu0 0
          %772 = vmatprep.mubr.bf16.mxu0 0
          %773 = vmatmul.mubr.bf16.gmra.mxu0 %v738
          %v774 = vpop.f32.mrf.mxu0
          %v775 = vadd.f32 %v719, %v774
          %v776 = vpop.f32.mrf.mxu0
          %v777 = vadd.f32 %v723, %v776
          %v778 = vpop.f32.mrf.mxu0
          %v779 = vpop.f32.mrf.mxu0
          %780 = vdwg.mxu0
          %781 = vmatprep.subr.bf16.mxu0 0
          %782 = vmatpush1.bf16.msra.mxu0 0
          %783 = vmatprep.subr.bf16.mxu0 0
          %784 = vmatpush1.bf16.msra.mxu0 0
          %785 = vmatprep.subr.bf16.mxu0 0
          %786 = vmatpush1.bf16.msra.mxu0 0
          %787 = vmatprep.subr.bf16.mxu0 0
          %788 = vmatpush1.bf16.msra.mxu0 0
          %789 = vmatprep.subr.bf16.mxu0 0
          %790 = vmatpush1.bf16.msra.mxu0 0
          %791 = vmatprep.subr.bf16.mxu0 0
          %792 = vmatpush1.bf16.msra.mxu0 0
          %793 = vmatprep.subr.bf16.mxu0 %v706
          %794 = vmatpush1.bf16.msra.mxu0 %v705
          %795 = vmatprep.subr.bf16.mxu0 %v702
          %796 = vmatpush1.bf16.msra.mxu0 %v701
          %797 = vmatprep.subr.bf16.mxu0 0
          %798 = vmatpush2.bf16.msra.mxu0 0
          %799 = vmatprep.subr.bf16.mxu0 0
          %800 = vmatpush2.bf16.msra.mxu0 0
          %801 = vmatprep.subr.bf16.mxu0 0
          %802 = vmatpush2.bf16.msra.mxu0 0
          %803 = vmatprep.subr.bf16.mxu0 0
          %804 = vmatpush2.bf16.msra.mxu0 0
          %805 = vmatprep.subr.bf16.mxu0 0
          %806 = vmatpush2.bf16.msra.mxu0 0
          %807 = vmatprep.subr.bf16.mxu0 0
          %808 = vmatpush2.bf16.msra.mxu0 0
          %809 = vmatprep.subr.bf16.mxu0 0
          %810 = vmatpush2.bf16.msra.mxu0 0
          %811 = vmatprep.subr.bf16.mxu0 0
          %812 = vmatpush2.bf16.msra.mxu0 0
          %813 = vmatprep.mubr.bf16.mxu0 0
          %814 = vmatmul.mubr.bf16.gmra.mxu0 %v738
          %v815 = vpop.f32.mrf.mxu0
          %v816 = vadd.f32 %v727, %v815
          %v817 = vpop.f32.mrf.mxu0
          %v818 = vadd.f32 %v731, %v817
          %v819 = vpop.f32.mrf.mxu0
          %v820 = vpop.f32.mrf.mxu0
          %821 = vdwg.mxu0
          %v822 = vpack.c.bf16 %v775, %v775
          %v823 = vpack.c.bf16 %v777, %v777
          %v824 = vpack.c.bf16 %v816, %v816
          %v825 = vpack.c.bf16 %v818, %v818
          %v826 = vld [vmem:[%s5] sm:$0xff]
          %v827 = vld [vmem:[%s5 + $0x8] sm:$0xff]
          %v828 = vld [vmem:[%s5 + $0x10] sm:$0xff]
          %v829 = vld [vmem:[%s5 + $0x18] sm:$0xff]
          %v830 = vld [vmem:[%s5 + $0x20] sm:$0xff]
          %v831 = vld [vmem:[%s5 + $0x28] sm:$0xff]
          %v832 = vld [vmem:[%s5 + $0x30] sm:$0xff]
          %v833 = vld [vmem:[%s5 + $0x38] sm:$0xff]
          %v834 = vld [vmem:[%s5 + $0x40] sm:$0xff]
          %v835 = vld [vmem:[%s5 + $0x48] sm:$0xff]
          %v836 = vld [vmem:[%s5 + $0x50] sm:$0xff]
          %v837 = vld [vmem:[%s5 + $0x58] sm:$0xff]
          %v838 = vld [vmem:[%s5 + $0x60] sm:$0xff]
          %v839 = vld [vmem:[%s5 + $0x68] sm:$0xff]
          %v840 = vld [vmem:[%s5 + $0x70] sm:$0xff]
          %v841 = vld [vmem:[%s5 + $0x78] sm:$0xff]
          %v842 = vld [vmem:[%s5 + $0x80] sm:$0xff]
          %v843 = vld [vmem:[%s5 + $0x88] sm:$0xff]
          %v844 = vld [vmem:[%s5 + $0x90] sm:$0xff]
          %v845 = vld [vmem:[%s5 + $0x98] sm:$0xff]
          %v846 = vld [vmem:[%s5 + $0xa0] sm:$0xff]
          %v847 = vld [vmem:[%s5 + $0xa8] sm:$0xff]
          %v848 = vld [vmem:[%s5 + $0xb0] sm:$0xff]
          %v849 = vld [vmem:[%s5 + $0xb8] sm:$0xff]
          %v850 = vld [vmem:[%s5 + $0xc0] sm:$0xff]
          %v851 = vld [vmem:[%s5 + $0xc8] sm:$0xff]
          %v852 = vld [vmem:[%s5 + $0xd0] sm:$0xff]
          %v853 = vld [vmem:[%s5 + $0xd8] sm:$0xff]
          %v854 = vld [vmem:[%s5 + $0xe0] sm:$0xff]
          %v855 = vld [vmem:[%s5 + $0xe8] sm:$0xff]
          %v856 = vld [vmem:[%s5 + $0xf0] sm:$0xff]
          %v857 = vld [vmem:[%s5 + $0xf8] sm:$0xff]
          %v858 = vld [vmem:[%s5 + $0x100] sm:$0xff]
          %v859 = vld [vmem:[%s5 + $0x108] sm:$0xff]
          %v860 = vld [vmem:[%s5 + $0x110] sm:$0xff]
          %v861 = vld [vmem:[%s5 + $0x118] sm:$0xff]
          %v862 = vld [vmem:[%s5 + $0x120] sm:$0xff]
          %v863 = vld [vmem:[%s5 + $0x128] sm:$0xff]
          %v864 = vld [vmem:[%s5 + $0x130] sm:$0xff]
          %v865 = vld [vmem:[%s5 + $0x138] sm:$0xff]
          %v866 = vld [vmem:[%s5 + $0x140] sm:$0xff]
          %v867 = vld [vmem:[%s5 + $0x148] sm:$0xff]
          %v868 = vld [vmem:[%s5 + $0x150] sm:$0xff]
          %v869 = vld [vmem:[%s5 + $0x158] sm:$0xff]
          %v870 = vld [vmem:[%s5 + $0x160] sm:$0xff]
          %v871 = vld [vmem:[%s5 + $0x168] sm:$0xff]
          %v872 = vld [vmem:[%s5 + $0x170] sm:$0xff]
          %v873 = vld [vmem:[%s5 + $0x178] sm:$0xff]
          %v874 = vld [vmem:[%s5 + $0x180] sm:$0xff]
          %v875 = vld [vmem:[%s5 + $0x188] sm:$0xff]
          %v876 = vld [vmem:[%s5 + $0x190] sm:$0xff]
          %v877 = vld [vmem:[%s5 + $0x198] sm:$0xff]
          %v878 = vld [vmem:[%s5 + $0x1a0] sm:$0xff]
          %v879 = vld [vmem:[%s5 + $0x1a8] sm:$0xff]
          %v880 = vld [vmem:[%s5 + $0x1b0] sm:$0xff]
          %v881 = vld [vmem:[%s5 + $0x1b8] sm:$0xff]
          %v882 = vld [vmem:[%s5 + $0x1c0] sm:$0xff]
          %v883 = vld [vmem:[%s5 + $0x1c8] sm:$0xff]
          %v884 = vld [vmem:[%s5 + $0x1d0] sm:$0xff]
          %v885 = vld [vmem:[%s5 + $0x1d8] sm:$0xff]
          %v886 = vld [vmem:[%s5 + $0x1e0] sm:$0xff]
          %v887 = vld [vmem:[%s5 + $0x1e8] sm:$0xff]
          %v888 = vld [vmem:[%s5 + $0x1f0] sm:$0xff]
          %v889 = vld [vmem:[%s5 + $0x1f8] sm:$0xff]
          %v890 = vld [vmem:[%s5 + $0x200] sm:$0xff]
          %v891 = vld [vmem:[%s5 + $0x208] sm:$0xff]
          %v892 = vld [vmem:[%s5 + $0x210] sm:$0xff]
          %v893 = vld [vmem:[%s5 + $0x218] sm:$0xff]
          %v894 = vld [vmem:[%s5 + $0x220] sm:$0xff]
          %v895 = vld [vmem:[%s5 + $0x228] sm:$0xff]
          %v896 = vld [vmem:[%s5 + $0x230] sm:$0xff]
          %v897 = vld [vmem:[%s5 + $0x238] sm:$0xff]
          %v898 = vld [vmem:[%s5 + $0x240] sm:$0xff]
          %v899 = vld [vmem:[%s5 + $0x248] sm:$0xff]
          %v900 = vld [vmem:[%s5 + $0x250] sm:$0xff]
          %v901 = vld [vmem:[%s5 + $0x258] sm:$0xff]
          %v902 = vld [vmem:[%s5 + $0x260] sm:$0xff]
          %v903 = vld [vmem:[%s5 + $0x268] sm:$0xff]
          %v904 = vld [vmem:[%s5 + $0x270] sm:$0xff]
          %v905 = vld [vmem:[%s5 + $0x278] sm:$0xff]
          %v906 = vld [vmem:[%s5 + $0x280] sm:$0xff]
          %v907 = vld [vmem:[%s5 + $0x288] sm:$0xff]
          %v908 = vld [vmem:[%s5 + $0x290] sm:$0xff]
          %v909 = vld [vmem:[%s5 + $0x298] sm:$0xff]
          %v910 = vld [vmem:[%s5 + $0x2a0] sm:$0xff]
          %v911 = vld [vmem:[%s5 + $0x2a8] sm:$0xff]
          %v912 = vld [vmem:[%s5 + $0x2b0] sm:$0xff]
          %v913 = vld [vmem:[%s5 + $0x2b8] sm:$0xff]
          %v914 = vld [vmem:[%s5 + $0x2c0] sm:$0xff]
          %v915 = vld [vmem:[%s5 + $0x2c8] sm:$0xff]
          %v916 = vld [vmem:[%s5 + $0x2d0] sm:$0xff]
          %v917 = vld [vmem:[%s5 + $0x2d8] sm:$0xff]
          %v918 = vld [vmem:[%s5 + $0x2e0] sm:$0xff]
          %v919 = vld [vmem:[%s5 + $0x2e8] sm:$0xff]
          %v920 = vld [vmem:[%s5 + $0x2f0] sm:$0xff]
          %v921 = vld [vmem:[%s5 + $0x2f8] sm:$0xff]
          %v922 = vld [vmem:[%s5 + $0x300] sm:$0xff]
          %v923 = vld [vmem:[%s5 + $0x308] sm:$0xff]
          %v924 = vld [vmem:[%s5 + $0x310] sm:$0xff]
          %v925 = vld [vmem:[%s5 + $0x318] sm:$0xff]
          %v926 = vld [vmem:[%s5 + $0x320] sm:$0xff]
          %v927 = vld [vmem:[%s5 + $0x328] sm:$0xff]
          %v928 = vld [vmem:[%s5 + $0x330] sm:$0xff]
          %v929 = vld [vmem:[%s5 + $0x338] sm:$0xff]
          %v930 = vld [vmem:[%s5 + $0x340] sm:$0xff]
          %v931 = vld [vmem:[%s5 + $0x348] sm:$0xff]
          %v932 = vld [vmem:[%s5 + $0x350] sm:$0xff]
          %v933 = vld [vmem:[%s5 + $0x358] sm:$0xff]
          %v934 = vld [vmem:[%s5 + $0x360] sm:$0xff]
          %v935 = vld [vmem:[%s5 + $0x368] sm:$0xff]
          %v936 = vld [vmem:[%s5 + $0x370] sm:$0xff]
          %v937 = vld [vmem:[%s5 + $0x378] sm:$0xff]
          %v938 = vld [vmem:[%s5 + $0x380] sm:$0xff]
          %v939 = vld [vmem:[%s5 + $0x388] sm:$0xff]
          %v940 = vld [vmem:[%s5 + $0x390] sm:$0xff]
          %v941 = vld [vmem:[%s5 + $0x398] sm:$0xff]
          %v942 = vld [vmem:[%s5 + $0x3a0] sm:$0xff]
          %v943 = vld [vmem:[%s5 + $0x3a8] sm:$0xff]
          %v944 = vld [vmem:[%s5 + $0x3b0] sm:$0xff]
          %v945 = vld [vmem:[%s5 + $0x3b8] sm:$0xff]
          %v946 = vld [vmem:[%s5 + $0x3c0] sm:$0xff]
          %v947 = vld [vmem:[%s5 + $0x3c8] sm:$0xff]
          %v948 = vld [vmem:[%s5 + $0x3d0] sm:$0xff]
          %v949 = vld [vmem:[%s5 + $0x3d8] sm:$0xff]
          %v950 = vld [vmem:[%s5 + $0x3e0] sm:$0xff]
          %v951 = vld [vmem:[%s5 + $0x3e8] sm:$0xff]
          %v952 = vld [vmem:[%s5 + $0x3f0] sm:$0xff]
          %v953 = vld [vmem:[%s5 + $0x3f8] sm:$0xff]
          %v954 = vld [vmem:[%s5 + $0x400] sm:$0xff]
          %v955 = vld [vmem:[%s5 + $0x408] sm:$0xff]
          %v956 = vld [vmem:[%s5 + $0x410] sm:$0xff]
          %v957 = vld [vmem:[%s5 + $0x418] sm:$0xff]
          %v958 = vld [vmem:[%s5 + $0x420] sm:$0xff]
          %v959 = vld [vmem:[%s5 + $0x428] sm:$0xff]
          %v960 = vld [vmem:[%s5 + $0x430] sm:$0xff]
          %v961 = vld [vmem:[%s5 + $0x438] sm:$0xff]
          %v962 = vld [vmem:[%s5 + $0x440] sm:$0xff]
          %v963 = vld [vmem:[%s5 + $0x448] sm:$0xff]
          %v964 = vld [vmem:[%s5 + $0x450] sm:$0xff]
          %v965 = vld [vmem:[%s5 + $0x458] sm:$0xff]
          %v966 = vld [vmem:[%s5 + $0x460] sm:$0xff]
          %v967 = vld [vmem:[%s5 + $0x468] sm:$0xff]
          %v968 = vld [vmem:[%s5 + $0x470] sm:$0xff]
          %v969 = vld [vmem:[%s5 + $0x478] sm:$0xff]
          %v970 = vld [vmem:[%s5 + $0x480] sm:$0xff]
          %v971 = vld [vmem:[%s5 + $0x488] sm:$0xff]
          %v972 = vld [vmem:[%s5 + $0x490] sm:$0xff]
          %v973 = vld [vmem:[%s5 + $0x498] sm:$0xff]
          %v974 = vld [vmem:[%s5 + $0x4a0] sm:$0xff]
          %v975 = vld [vmem:[%s5 + $0x4a8] sm:$0xff]
          %v976 = vld [vmem:[%s5 + $0x4b0] sm:$0xff]
          %v977 = vld [vmem:[%s5 + $0x4b8] sm:$0xff]
          %v978 = vld [vmem:[%s5 + $0x4c0] sm:$0xff]
          %v979 = vld [vmem:[%s5 + $0x4c8] sm:$0xff]
          %v980 = vld [vmem:[%s5 + $0x4d0] sm:$0xff]
          %v981 = vld [vmem:[%s5 + $0x4d8] sm:$0xff]
          %v982 = vld [vmem:[%s5 + $0x4e0] sm:$0xff]
          %v983 = vld [vmem:[%s5 + $0x4e8] sm:$0xff]
          %v984 = vld [vmem:[%s5 + $0x4f0] sm:$0xff]
          %v985 = vld [vmem:[%s5 + $0x4f8] sm:$0xff]
          %v986 = vld [vmem:[%s5 + $0x500] sm:$0xff]
          %v987 = vld [vmem:[%s5 + $0x508] sm:$0xff]
          %v988 = vld [vmem:[%s5 + $0x510] sm:$0xff]
          %v989 = vld [vmem:[%s5 + $0x518] sm:$0xff]
          %v990 = vld [vmem:[%s5 + $0x520] sm:$0xff]
          %v991 = vld [vmem:[%s5 + $0x528] sm:$0xff]
          %v992 = vld [vmem:[%s5 + $0x530] sm:$0xff]
          %v993 = vld [vmem:[%s5 + $0x538] sm:$0xff]
          %v994 = vld [vmem:[%s5 + $0x540] sm:$0xff]
          %v995 = vld [vmem:[%s5 + $0x548] sm:$0xff]
          %v996 = vld [vmem:[%s5 + $0x550] sm:$0xff]
          %v997 = vld [vmem:[%s5 + $0x558] sm:$0xff]
          %v998 = vld [vmem:[%s5 + $0x560] sm:$0xff]
          %v999 = vld [vmem:[%s5 + $0x568] sm:$0xff]
          %v1000 = vld [vmem:[%s5 + $0x570] sm:$0xff]
          %v1001 = vld [vmem:[%s5 + $0x578] sm:$0xff]
          %v1002 = vld [vmem:[%s5 + $0x580] sm:$0xff]
          %v1003 = vld [vmem:[%s5 + $0x588] sm:$0xff]
          %v1004 = vld [vmem:[%s5 + $0x590] sm:$0xff]
          %v1005 = vld [vmem:[%s5 + $0x598] sm:$0xff]
          %v1006 = vld [vmem:[%s5 + $0x5a0] sm:$0xff]
          %v1007 = vld [vmem:[%s5 + $0x5a8] sm:$0xff]
          %v1008 = vld [vmem:[%s5 + $0x5b0] sm:$0xff]
          %v1009 = vld [vmem:[%s5 + $0x5b8] sm:$0xff]
          %v1010 = vld [vmem:[%s5 + $0x5c0] sm:$0xff]
          %v1011 = vld [vmem:[%s5 + $0x5c8] sm:$0xff]
          %v1012 = vld [vmem:[%s5 + $0x5d0] sm:$0xff]
          %v1013 = vld [vmem:[%s5 + $0x5d8] sm:$0xff]
          %v1014 = vld [vmem:[%s5 + $0x5e0] sm:$0xff]
          %v1015 = vld [vmem:[%s5 + $0x5e8] sm:$0xff]
          %v1016 = vld [vmem:[%s5 + $0x5f0] sm:$0xff]
          %v1017 = vld [vmem:[%s5 + $0x5f8] sm:$0xff]
          %v1018 = vld [vmem:[%s5 + $0x600] sm:$0xff]
          %v1019 = vld [vmem:[%s5 + $0x608] sm:$0xff]
          %v1020 = vld [vmem:[%s5 + $0x610] sm:$0xff]
          %v1021 = vld [vmem:[%s5 + $0x618] sm:$0xff]
          %v1022 = vld [vmem:[%s5 + $0x620] sm:$0xff]
          %v1023 = vld [vmem:[%s5 + $0x628] sm:$0xff]
          %v1024 = vld [vmem:[%s5 + $0x630] sm:$0xff]
          %v1025 = vld [vmem:[%s5 + $0x638] sm:$0xff]
          %v1026 = vld [vmem:[%s5 + $0x640] sm:$0xff]
          %v1027 = vld [vmem:[%s5 + $0x648] sm:$0xff]
          %v1028 = vld [vmem:[%s5 + $0x650] sm:$0xff]
          %v1029 = vld [vmem:[%s5 + $0x658] sm:$0xff]
          %v1030 = vld [vmem:[%s5 + $0x660] sm:$0xff]
          %v1031 = vld [vmem:[%s5 + $0x668] sm:$0xff]
          %v1032 = vld [vmem:[%s5 + $0x670] sm:$0xff]
          %v1033 = vld [vmem:[%s5 + $0x678] sm:$0xff]
          %v1034 = vld [vmem:[%s5 + $0x680] sm:$0xff]
          %v1035 = vld [vmem:[%s5 + $0x688] sm:$0xff]
          %v1036 = vld [vmem:[%s5 + $0x690] sm:$0xff]
          %v1037 = vld [vmem:[%s5 + $0x698] sm:$0xff]
          %v1038 = vld [vmem:[%s5 + $0x6a0] sm:$0xff]
          %v1039 = vld [vmem:[%s5 + $0x6a8] sm:$0xff]
          %v1040 = vld [vmem:[%s5 + $0x6b0] sm:$0xff]
          %v1041 = vld [vmem:[%s5 + $0x6b8] sm:$0xff]
          %v1042 = vld [vmem:[%s5 + $0x6c0] sm:$0xff]
          %v1043 = vld [vmem:[%s5 + $0x6c8] sm:$0xff]
          %v1044 = vld [vmem:[%s5 + $0x6d0] sm:$0xff]
          %v1045 = vld [vmem:[%s5 + $0x6d8] sm:$0xff]
          %v1046 = vld [vmem:[%s5 + $0x6e0] sm:$0xff]
          %v1047 = vld [vmem:[%s5 + $0x6e8] sm:$0xff]
          %v1048 = vld [vmem:[%s5 + $0x6f0] sm:$0xff]
          %v1049 = vld [vmem:[%s5 + $0x6f8] sm:$0xff]
          %v1050 = vld [vmem:[%s5 + $0x700] sm:$0xff]
          %v1051 = vld [vmem:[%s5 + $0x708] sm:$0xff]
          %v1052 = vld [vmem:[%s5 + $0x710] sm:$0xff]
          %v1053 = vld [vmem:[%s5 + $0x718] sm:$0xff]
          %v1054 = vld [vmem:[%s5 + $0x720] sm:$0xff]
          %v1055 = vld [vmem:[%s5 + $0x728] sm:$0xff]
          %v1056 = vld [vmem:[%s5 + $0x730] sm:$0xff]
          %v1057 = vld [vmem:[%s5 + $0x738] sm:$0xff]
          %v1058 = vld [vmem:[%s5 + $0x740] sm:$0xff]
          %v1059 = vld [vmem:[%s5 + $0x748] sm:$0xff]
          %v1060 = vld [vmem:[%s5 + $0x750] sm:$0xff]
          %v1061 = vld [vmem:[%s5 + $0x758] sm:$0xff]
          %v1062 = vld [vmem:[%s5 + $0x760] sm:$0xff]
          %v1063 = vld [vmem:[%s5 + $0x768] sm:$0xff]
          %v1064 = vld [vmem:[%s5 + $0x770] sm:$0xff]
          %v1065 = vld [vmem:[%s5 + $0x778] sm:$0xff]
          %v1066 = vld [vmem:[%s5 + $0x780] sm:$0xff]
          %v1067 = vld [vmem:[%s5 + $0x788] sm:$0xff]
          %v1068 = vld [vmem:[%s5 + $0x790] sm:$0xff]
          %v1069 = vld [vmem:[%s5 + $0x798] sm:$0xff]
          %v1070 = vld [vmem:[%s5 + $0x7a0] sm:$0xff]
          %v1071 = vld [vmem:[%s5 + $0x7a8] sm:$0xff]
          %v1072 = vld [vmem:[%s5 + $0x7b0] sm:$0xff]
          %v1073 = vld [vmem:[%s5 + $0x7b8] sm:$0xff]
          %v1074 = vld [vmem:[%s5 + $0x7c0] sm:$0xff]
          %v1075 = vld [vmem:[%s5 + $0x7c8] sm:$0xff]
          %v1076 = vld [vmem:[%s5 + $0x7d0] sm:$0xff]
          %v1077 = vld [vmem:[%s5 + $0x7d8] sm:$0xff]
          %v1078 = vld [vmem:[%s5 + $0x7e0] sm:$0xff]
          %v1079 = vld [vmem:[%s5 + $0x7e8] sm:$0xff]
          %v1080 = vld [vmem:[%s5 + $0x7f0] sm:$0xff]
          %v1081 = vld [vmem:[%s5 + $0x7f8] sm:$0xff]
          %v1082 = vld [vmem:[%s6] sm:$0xff]
          %v1339 = vunpack.c.l.b16 %v826
          %v1340 = vunpack.c.h.b16 %v826
          %v1341 = vunpack.c.l.b16 %v827
          %v1342 = vunpack.c.h.b16 %v827
          %v1343 = vunpack.c.l.b16 %v828
          %v1344 = vunpack.c.h.b16 %v828
          %v1345 = vunpack.c.l.b16 %v829
          %v1346 = vunpack.c.h.b16 %v829
          %v1347 = vunpack.c.l.b16 %v830
          %v1348 = vunpack.c.h.b16 %v830
          %v1349 = vunpack.c.l.b16 %v831
          %v1350 = vunpack.c.h.b16 %v831
          %v1351 = vunpack.c.l.b16 %v832
          %v1352 = vunpack.c.h.b16 %v832
          %v1353 = vunpack.c.l.b16 %v833
          %v1354 = vunpack.c.h.b16 %v833
          %v1355 = vunpack.c.l.b16 %v834
          %v1356 = vunpack.c.h.b16 %v834
          %v1357 = vunpack.c.l.b16 %v835
          %v1358 = vunpack.c.h.b16 %v835
          %v1359 = vunpack.c.l.b16 %v836
          %v1360 = vunpack.c.h.b16 %v836
          %v1361 = vunpack.c.l.b16 %v837
          %v1362 = vunpack.c.h.b16 %v837
          %v1363 = vunpack.c.l.b16 %v838
          %v1364 = vunpack.c.h.b16 %v838
          %v1365 = vunpack.c.l.b16 %v839
          %v1366 = vunpack.c.h.b16 %v839
          %v1367 = vunpack.c.l.b16 %v840
          %v1368 = vunpack.c.h.b16 %v840
          %v1369 = vunpack.c.l.b16 %v841
          %v1370 = vunpack.c.h.b16 %v841
          %v1371 = vunpack.c.l.b16 %v842
          %v1372 = vunpack.c.h.b16 %v842
          %v1373 = vunpack.c.l.b16 %v843
          %v1374 = vunpack.c.h.b16 %v843
          %v1375 = vunpack.c.l.b16 %v844
          %v1376 = vunpack.c.h.b16 %v844
          %v1377 = vunpack.c.l.b16 %v845
          %v1378 = vunpack.c.h.b16 %v845
          %v1379 = vunpack.c.l.b16 %v846
          %v1380 = vunpack.c.h.b16 %v846
          %v1381 = vunpack.c.l.b16 %v847
          %v1382 = vunpack.c.h.b16 %v847
          %v1383 = vunpack.c.l.b16 %v848
          %v1384 = vunpack.c.h.b16 %v848
          %v1385 = vunpack.c.l.b16 %v849
          %v1386 = vunpack.c.h.b16 %v849
          %v1387 = vunpack.c.l.b16 %v850
          %v1388 = vunpack.c.h.b16 %v850
          %v1389 = vunpack.c.l.b16 %v851
          %v1390 = vunpack.c.h.b16 %v851
          %v1391 = vunpack.c.l.b16 %v852
          %v1392 = vunpack.c.h.b16 %v852
          %v1393 = vunpack.c.l.b16 %v853
          %v1394 = vunpack.c.h.b16 %v853
          %v1395 = vunpack.c.l.b16 %v854
          %v1396 = vunpack.c.h.b16 %v854
          %v1397 = vunpack.c.l.b16 %v855
          %v1398 = vunpack.c.h.b16 %v855
          %v1399 = vunpack.c.l.b16 %v856
          %v1400 = vunpack.c.h.b16 %v856
          %v1401 = vunpack.c.l.b16 %v857
          %v1402 = vunpack.c.h.b16 %v857
          %v1403 = vunpack.c.l.b16 %v858
          %v1404 = vunpack.c.h.b16 %v858
          %v1405 = vunpack.c.l.b16 %v859
          %v1406 = vunpack.c.h.b16 %v859
          %v1407 = vunpack.c.l.b16 %v860
          %v1408 = vunpack.c.h.b16 %v860
          %v1409 = vunpack.c.l.b16 %v861
          %v1410 = vunpack.c.h.b16 %v861
          %v1411 = vunpack.c.l.b16 %v862
          %v1412 = vunpack.c.h.b16 %v862
          %v1413 = vunpack.c.l.b16 %v863
          %v1414 = vunpack.c.h.b16 %v863
          %v1415 = vunpack.c.l.b16 %v864
          %v1416 = vunpack.c.h.b16 %v864
          %v1417 = vunpack.c.l.b16 %v865
          %v1418 = vunpack.c.h.b16 %v865
          %v1419 = vunpack.c.l.b16 %v866
          %v1420 = vunpack.c.h.b16 %v866
          %v1421 = vunpack.c.l.b16 %v867
          %v1422 = vunpack.c.h.b16 %v867
          %v1423 = vunpack.c.l.b16 %v868
          %v1424 = vunpack.c.h.b16 %v868
          %v1425 = vunpack.c.l.b16 %v869
          %v1426 = vunpack.c.h.b16 %v869
          %v1427 = vunpack.c.l.b16 %v870
          %v1428 = vunpack.c.h.b16 %v870
          %v1429 = vunpack.c.l.b16 %v871
          %v1430 = vunpack.c.h.b16 %v871
          %v1431 = vunpack.c.l.b16 %v872
          %v1432 = vunpack.c.h.b16 %v872
          %v1433 = vunpack.c.l.b16 %v873
          %v1434 = vunpack.c.h.b16 %v873
          %v1435 = vunpack.c.l.b16 %v874
          %v1436 = vunpack.c.h.b16 %v874
          %v1437 = vunpack.c.l.b16 %v875
          %v1438 = vunpack.c.h.b16 %v875
          %v1439 = vunpack.c.l.b16 %v876
          %v1440 = vunpack.c.h.b16 %v876
          %v1441 = vunpack.c.l.b16 %v877
          %v1442 = vunpack.c.h.b16 %v877
          %v1443 = vunpack.c.l.b16 %v878
          %v1444 = vunpack.c.h.b16 %v878
          %v1445 = vunpack.c.l.b16 %v879
          %v1446 = vunpack.c.h.b16 %v879
          %v1447 = vunpack.c.l.b16 %v880
          %v1448 = vunpack.c.h.b16 %v880
          %v1449 = vunpack.c.l.b16 %v881
          %v1450 = vunpack.c.h.b16 %v881
          %v1451 = vunpack.c.l.b16 %v882
          %v1452 = vunpack.c.h.b16 %v882
          %v1453 = vunpack.c.l.b16 %v883
          %v1454 = vunpack.c.h.b16 %v883
          %v1455 = vunpack.c.l.b16 %v884
          %v1456 = vunpack.c.h.b16 %v884
          %v1457 = vunpack.c.l.b16 %v885
          %v1458 = vunpack.c.h.b16 %v885
          %v1459 = vunpack.c.l.b16 %v886
          %v1460 = vunpack.c.h.b16 %v886
          %v1461 = vunpack.c.l.b16 %v887
          %v1462 = vunpack.c.h.b16 %v887
          %v1463 = vunpack.c.l.b16 %v888
          %v1464 = vunpack.c.h.b16 %v888
          %v1465 = vunpack.c.l.b16 %v889
          %v1466 = vunpack.c.h.b16 %v889
          %v1467 = vunpack.c.l.b16 %v890
          %v1468 = vunpack.c.h.b16 %v890
          %v1469 = vunpack.c.l.b16 %v891
          %v1470 = vunpack.c.h.b16 %v891
          %v1471 = vunpack.c.l.b16 %v892
          %v1472 = vunpack.c.h.b16 %v892
          %v1473 = vunpack.c.l.b16 %v893
          %v1474 = vunpack.c.h.b16 %v893
          %v1475 = vunpack.c.l.b16 %v894
          %v1476 = vunpack.c.h.b16 %v894
          %v1477 = vunpack.c.l.b16 %v895
          %v1478 = vunpack.c.h.b16 %v895
          %v1479 = vunpack.c.l.b16 %v896
          %v1480 = vunpack.c.h.b16 %v896
          %v1481 = vunpack.c.l.b16 %v897
          %v1482 = vunpack.c.h.b16 %v897
          %v1483 = vunpack.c.l.b16 %v898
          %v1484 = vunpack.c.h.b16 %v898
          %v1485 = vunpack.c.l.b16 %v899
          %v1486 = vunpack.c.h.b16 %v899
          %v1487 = vunpack.c.l.b16 %v900
          %v1488 = vunpack.c.h.b16 %v900
          %v1489 = vunpack.c.l.b16 %v901
          %v1490 = vunpack.c.h.b16 %v901
          %v1491 = vunpack.c.l.b16 %v902
          %v1492 = vunpack.c.h.b16 %v902
          %v1493 = vunpack.c.l.b16 %v903
          %v1494 = vunpack.c.h.b16 %v903
          %v1495 = vunpack.c.l.b16 %v904
          %v1496 = vunpack.c.h.b16 %v904
          %v1497 = vunpack.c.l.b16 %v905
          %v1498 = vunpack.c.h.b16 %v905
          %v1499 = vunpack.c.l.b16 %v906
          %v1500 = vunpack.c.h.b16 %v906
          %v1501 = vunpack.c.l.b16 %v907
          %v1502 = vunpack.c.h.b16 %v907
          %v1503 = vunpack.c.l.b16 %v908
          %v1504 = vunpack.c.h.b16 %v908
          %v1505 = vunpack.c.l.b16 %v909
          %v1506 = vunpack.c.h.b16 %v909
          %v1507 = vunpack.c.l.b16 %v910
          %v1508 = vunpack.c.h.b16 %v910
          %v1509 = vunpack.c.l.b16 %v911
          %v1510 = vunpack.c.h.b16 %v911
          %v1511 = vunpack.c.l.b16 %v912
          %v1512 = vunpack.c.h.b16 %v912
          %v1513 = vunpack.c.l.b16 %v913
          %v1514 = vunpack.c.h.b16 %v913
          %v1515 = vunpack.c.l.b16 %v914
          %v1516 = vunpack.c.h.b16 %v914
          %v1517 = vunpack.c.l.b16 %v915
          %v1518 = vunpack.c.h.b16 %v915
          %v1519 = vunpack.c.l.b16 %v916
          %v1520 = vunpack.c.h.b16 %v916
          %v1521 = vunpack.c.l.b16 %v917
          %v1522 = vunpack.c.h.b16 %v917
          %v1523 = vunpack.c.l.b16 %v918
          %v1524 = vunpack.c.h.b16 %v918
          %v1525 = vunpack.c.l.b16 %v919
          %v1526 = vunpack.c.h.b16 %v919
          %v1527 = vunpack.c.l.b16 %v920
          %v1528 = vunpack.c.h.b16 %v920
          %v1529 = vunpack.c.l.b16 %v921
          %v1530 = vunpack.c.h.b16 %v921
          %v1531 = vunpack.c.l.b16 %v922
          %v1532 = vunpack.c.h.b16 %v922
          %v1533 = vunpack.c.l.b16 %v923
          %v1534 = vunpack.c.h.b16 %v923
          %v1535 = vunpack.c.l.b16 %v924
          %v1536 = vunpack.c.h.b16 %v924
          %v1537 = vunpack.c.l.b16 %v925
          %v1538 = vunpack.c.h.b16 %v925
          %v1539 = vunpack.c.l.b16 %v926
          %v1540 = vunpack.c.h.b16 %v926
          %v1541 = vunpack.c.l.b16 %v927
          %v1542 = vunpack.c.h.b16 %v927
          %v1543 = vunpack.c.l.b16 %v928
          %v1544 = vunpack.c.h.b16 %v928
          %v1545 = vunpack.c.l.b16 %v929
          %v1546 = vunpack.c.h.b16 %v929
          %v1547 = vunpack.c.l.b16 %v930
          %v1548 = vunpack.c.h.b16 %v930
          %v1549 = vunpack.c.l.b16 %v931
          %v1550 = vunpack.c.h.b16 %v931
          %v1551 = vunpack.c.l.b16 %v932
          %v1552 = vunpack.c.h.b16 %v932
          %v1553 = vunpack.c.l.b16 %v933
          %v1554 = vunpack.c.h.b16 %v933
          %v1555 = vunpack.c.l.b16 %v934
          %v1556 = vunpack.c.h.b16 %v934
          %v1557 = vunpack.c.l.b16 %v935
          %v1558 = vunpack.c.h.b16 %v935
          %v1559 = vunpack.c.l.b16 %v936
          %v1560 = vunpack.c.h.b16 %v936
          %v1561 = vunpack.c.l.b16 %v937
          %v1562 = vunpack.c.h.b16 %v937
          %v1563 = vunpack.c.l.b16 %v938
          %v1564 = vunpack.c.h.b16 %v938
          %v1565 = vunpack.c.l.b16 %v939
          %v1566 = vunpack.c.h.b16 %v939
          %v1567 = vunpack.c.l.b16 %v940
          %v1568 = vunpack.c.h.b16 %v940
          %v1569 = vunpack.c.l.b16 %v941
          %v1570 = vunpack.c.h.b16 %v941
          %v1571 = vunpack.c.l.b16 %v942
          %v1572 = vunpack.c.h.b16 %v942
          %v1573 = vunpack.c.l.b16 %v943
          %v1574 = vunpack.c.h.b16 %v943
          %v1575 = vunpack.c.l.b16 %v944
          %v1576 = vunpack.c.h.b16 %v944
          %v1577 = vunpack.c.l.b16 %v945
          %v1578 = vunpack.c.h.b16 %v945
          %v1579 = vunpack.c.l.b16 %v946
          %v1580 = vunpack.c.h.b16 %v946
          %v1581 = vunpack.c.l.b16 %v947
          %v1582 = vunpack.c.h.b16 %v947
          %v1583 = vunpack.c.l.b16 %v948
          %v1584 = vunpack.c.h.b16 %v948
          %v1585 = vunpack.c.l.b16 %v949
          %v1586 = vunpack.c.h.b16 %v949
          %v1587 = vunpack.c.l.b16 %v950
          %v1588 = vunpack.c.h.b16 %v950
          %v1589 = vunpack.c.l.b16 %v951
          %v1590 = vunpack.c.h.b16 %v951
          %v1591 = vunpack.c.l.b16 %v952
          %v1592 = vunpack.c.h.b16 %v952
          %v1593 = vunpack.c.l.b16 %v953
          %v1594 = vunpack.c.h.b16 %v953
          %v1595 = vunpack.c.l.b16 %v954
          %v1596 = vunpack.c.h.b16 %v954
          %v1597 = vunpack.c.l.b16 %v955
          %v1598 = vunpack.c.h.b16 %v955
          %v1599 = vunpack.c.l.b16 %v956
          %v1600 = vunpack.c.h.b16 %v956
          %v1601 = vunpack.c.l.b16 %v957
          %v1602 = vunpack.c.h.b16 %v957
          %v1603 = vunpack.c.l.b16 %v958
          %v1604 = vunpack.c.h.b16 %v958
          %v1605 = vunpack.c.l.b16 %v959
          %v1606 = vunpack.c.h.b16 %v959
          %v1607 = vunpack.c.l.b16 %v960
          %v1608 = vunpack.c.h.b16 %v960
          %v1609 = vunpack.c.l.b16 %v961
          %v1610 = vunpack.c.h.b16 %v961
          %v1611 = vunpack.c.l.b16 %v962
          %v1612 = vunpack.c.h.b16 %v962
          %v1613 = vunpack.c.l.b16 %v963
          %v1614 = vunpack.c.h.b16 %v963
          %v1615 = vunpack.c.l.b16 %v964
          %v1616 = vunpack.c.h.b16 %v964
          %v1617 = vunpack.c.l.b16 %v965
          %v1618 = vunpack.c.h.b16 %v965
          %v1619 = vunpack.c.l.b16 %v966
          %v1620 = vunpack.c.h.b16 %v966
          %v1621 = vunpack.c.l.b16 %v967
          %v1622 = vunpack.c.h.b16 %v967
          %v1623 = vunpack.c.l.b16 %v968
          %v1624 = vunpack.c.h.b16 %v968
          %v1625 = vunpack.c.l.b16 %v969
          %v1626 = vunpack.c.h.b16 %v969
          %v1627 = vunpack.c.l.b16 %v970
          %v1628 = vunpack.c.h.b16 %v970
          %v1629 = vunpack.c.l.b16 %v971
          %v1630 = vunpack.c.h.b16 %v971
          %v1631 = vunpack.c.l.b16 %v972
          %v1632 = vunpack.c.h.b16 %v972
          %v1633 = vunpack.c.l.b16 %v973
          %v1634 = vunpack.c.h.b16 %v973
          %v1635 = vunpack.c.l.b16 %v974
          %v1636 = vunpack.c.h.b16 %v974
          %v1637 = vunpack.c.l.b16 %v975
          %v1638 = vunpack.c.h.b16 %v975
          %v1639 = vunpack.c.l.b16 %v976
          %v1640 = vunpack.c.h.b16 %v976
          %v1641 = vunpack.c.l.b16 %v977
          %v1642 = vunpack.c.h.b16 %v977
          %v1643 = vunpack.c.l.b16 %v978
          %v1644 = vunpack.c.h.b16 %v978
          %v1645 = vunpack.c.l.b16 %v979
          %v1646 = vunpack.c.h.b16 %v979
          %v1647 = vunpack.c.l.b16 %v980
          %v1648 = vunpack.c.h.b16 %v980
          %v1649 = vunpack.c.l.b16 %v981
          %v1650 = vunpack.c.h.b16 %v981
          %v1651 = vunpack.c.l.b16 %v982
          %v1652 = vunpack.c.h.b16 %v982
          %v1653 = vunpack.c.l.b16 %v983
          %v1654 = vunpack.c.h.b16 %v983
          %v1655 = vunpack.c.l.b16 %v984
          %v1656 = vunpack.c.h.b16 %v984
          %v1657 = vunpack.c.l.b16 %v985
          %v1658 = vunpack.c.h.b16 %v985
          %v1659 = vunpack.c.l.b16 %v986
          %v1660 = vunpack.c.h.b16 %v986
          %v1661 = vunpack.c.l.b16 %v987
          %v1662 = vunpack.c.h.b16 %v987
          %v1663 = vunpack.c.l.b16 %v988
          %v1664 = vunpack.c.h.b16 %v988
          %v1665 = vunpack.c.l.b16 %v989
          %v1666 = vunpack.c.h.b16 %v989
          %v1667 = vunpack.c.l.b16 %v990
          %v1668 = vunpack.c.h.b16 %v990
          %v1669 = vunpack.c.l.b16 %v991
          %v1670 = vunpack.c.h.b16 %v991
          %v1671 = vunpack.c.l.b16 %v992
          %v1672 = vunpack.c.h.b16 %v992
          %v1673 = vunpack.c.l.b16 %v993
          %v1674 = vunpack.c.h.b16 %v993
          %v1675 = vunpack.c.l.b16 %v994
          %v1676 = vunpack.c.h.b16 %v994
          %v1677 = vunpack.c.l.b16 %v995
          %v1678 = vunpack.c.h.b16 %v995
          %v1679 = vunpack.c.l.b16 %v996
          %v1680 = vunpack.c.h.b16 %v996
          %v1681 = vunpack.c.l.b16 %v997
          %v1682 = vunpack.c.h.b16 %v997
          %v1683 = vunpack.c.l.b16 %v998
          %v1684 = vunpack.c.h.b16 %v998
          %v1685 = vunpack.c.l.b16 %v999
          %v1686 = vunpack.c.h.b16 %v999
          %v1687 = vunpack.c.l.b16 %v1000
          %v1688 = vunpack.c.h.b16 %v1000
          %v1689 = vunpack.c.l.b16 %v1001
          %v1690 = vunpack.c.h.b16 %v1001
          %v1691 = vunpack.c.l.b16 %v1002
          %v1692 = vunpack.c.h.b16 %v1002
          %v1693 = vunpack.c.l.b16 %v1003
          %v1694 = vunpack.c.h.b16 %v1003
          %v1695 = vunpack.c.l.b16 %v1004
          %v1696 = vunpack.c.h.b16 %v1004
          %v1697 = vunpack.c.l.b16 %v1005
          %v1698 = vunpack.c.h.b16 %v1005
          %v1699 = vunpack.c.l.b16 %v1006
          %v1700 = vunpack.c.h.b16 %v1006
          %v1701 = vunpack.c.l.b16 %v1007
          %v1702 = vunpack.c.h.b16 %v1007
          %v1703 = vunpack.c.l.b16 %v1008
          %v1704 = vunpack.c.h.b16 %v1008
          %v1705 = vunpack.c.l.b16 %v1009
          %v1706 = vunpack.c.h.b16 %v1009
          %v1707 = vunpack.c.l.b16 %v1010
          %v1708 = vunpack.c.h.b16 %v1010
          %v1709 = vunpack.c.l.b16 %v1011
          %v1710 = vunpack.c.h.b16 %v1011
          %v1711 = vunpack.c.l.b16 %v1012
          %v1712 = vunpack.c.h.b16 %v1012
          %v1713 = vunpack.c.l.b16 %v1013
          %v1714 = vunpack.c.h.b16 %v1013
          %v1715 = vunpack.c.l.b16 %v1014
          %v1716 = vunpack.c.h.b16 %v1014
          %v1717 = vunpack.c.l.b16 %v1015
          %v1718 = vunpack.c.h.b16 %v1015
          %v1719 = vunpack.c.l.b16 %v1016
          %v1720 = vunpack.c.h.b16 %v1016
          %v1721 = vunpack.c.l.b16 %v1017
          %v1722 = vunpack.c.h.b16 %v1017
          %v1723 = vunpack.c.l.b16 %v1018
          %v1724 = vunpack.c.h.b16 %v1018
          %v1725 = vunpack.c.l.b16 %v1019
          %v1726 = vunpack.c.h.b16 %v1019
          %v1727 = vunpack.c.l.b16 %v1020
          %v1728 = vunpack.c.h.b16 %v1020
          %v1729 = vunpack.c.l.b16 %v1021
          %v1730 = vunpack.c.h.b16 %v1021
          %v1731 = vunpack.c.l.b16 %v1022
          %v1732 = vunpack.c.h.b16 %v1022
          %v1733 = vunpack.c.l.b16 %v1023
          %v1734 = vunpack.c.h.b16 %v1023
          %v1735 = vunpack.c.l.b16 %v1024
          %v1736 = vunpack.c.h.b16 %v1024
          %v1737 = vunpack.c.l.b16 %v1025
          %v1738 = vunpack.c.h.b16 %v1025
          %v1739 = vunpack.c.l.b16 %v1026
          %v1740 = vunpack.c.h.b16 %v1026
          %v1741 = vunpack.c.l.b16 %v1027
          %v1742 = vunpack.c.h.b16 %v1027
          %v1743 = vunpack.c.l.b16 %v1028
          %v1744 = vunpack.c.h.b16 %v1028
          %v1745 = vunpack.c.l.b16 %v1029
          %v1746 = vunpack.c.h.b16 %v1029
          %v1747 = vunpack.c.l.b16 %v1030
          %v1748 = vunpack.c.h.b16 %v1030
          %v1749 = vunpack.c.l.b16 %v1031
          %v1750 = vunpack.c.h.b16 %v1031
          %v1751 = vunpack.c.l.b16 %v1032
          %v1752 = vunpack.c.h.b16 %v1032
          %v1753 = vunpack.c.l.b16 %v1033
          %v1754 = vunpack.c.h.b16 %v1033
          %v1755 = vunpack.c.l.b16 %v1034
          %v1756 = vunpack.c.h.b16 %v1034
          %v1757 = vunpack.c.l.b16 %v1035
          %v1758 = vunpack.c.h.b16 %v1035
          %v1759 = vunpack.c.l.b16 %v1036
          %v1760 = vunpack.c.h.b16 %v1036
          %v1761 = vunpack.c.l.b16 %v1037
          %v1762 = vunpack.c.h.b16 %v1037
          %v1763 = vunpack.c.l.b16 %v1038
          %v1764 = vunpack.c.h.b16 %v1038
          %v1765 = vunpack.c.l.b16 %v1039
          %v1766 = vunpack.c.h.b16 %v1039
          %v1767 = vunpack.c.l.b16 %v1040
          %v1768 = vunpack.c.h.b16 %v1040
          %v1769 = vunpack.c.l.b16 %v1041
          %v1770 = vunpack.c.h.b16 %v1041
          %v1771 = vunpack.c.l.b16 %v1042
          %v1772 = vunpack.c.h.b16 %v1042
          %v1773 = vunpack.c.l.b16 %v1043
          %v1774 = vunpack.c.h.b16 %v1043
          %v1775 = vunpack.c.l.b16 %v1044
          %v1776 = vunpack.c.h.b16 %v1044
          %v1777 = vunpack.c.l.b16 %v1045
          %v1778 = vunpack.c.h.b16 %v1045
          %v1779 = vunpack.c.l.b16 %v1046
          %v1780 = vunpack.c.h.b16 %v1046
          %v1781 = vunpack.c.l.b16 %v1047
          %v1782 = vunpack.c.h.b16 %v1047
          %v1783 = vunpack.c.l.b16 %v1048
          %v1784 = vunpack.c.h.b16 %v1048
          %v1785 = vunpack.c.l.b16 %v1049
          %v1786 = vunpack.c.h.b16 %v1049
          %v1787 = vunpack.c.l.b16 %v1050
          %v1788 = vunpack.c.h.b16 %v1050
          %v1789 = vunpack.c.l.b16 %v1051
          %v1790 = vunpack.c.h.b16 %v1051
          %v1791 = vunpack.c.l.b16 %v1052
          %v1792 = vunpack.c.h.b16 %v1052
          %v1793 = vunpack.c.l.b16 %v1053
          %v1794 = vunpack.c.h.b16 %v1053
          %v1795 = vunpack.c.l.b16 %v1054
          %v1796 = vunpack.c.h.b16 %v1054
          %v1797 = vunpack.c.l.b16 %v1055
          %v1798 = vunpack.c.h.b16 %v1055
          %v1799 = vunpack.c.l.b16 %v1056
          %v1800 = vunpack.c.h.b16 %v1056
          %v1801 = vunpack.c.l.b16 %v1057
          %v1802 = vunpack.c.h.b16 %v1057
          %v1803 = vunpack.c.l.b16 %v1058
          %v1804 = vunpack.c.h.b16 %v1058
          %v1805 = vunpack.c.l.b16 %v1059
          %v1806 = vunpack.c.h.b16 %v1059
          %v1807 = vunpack.c.l.b16 %v1060
          %v1808 = vunpack.c.h.b16 %v1060
          %v1809 = vunpack.c.l.b16 %v1061
          %v1810 = vunpack.c.h.b16 %v1061
          %v1811 = vunpack.c.l.b16 %v1062
          %v1812 = vunpack.c.h.b16 %v1062
          %v1813 = vunpack.c.l.b16 %v1063
          %v1814 = vunpack.c.h.b16 %v1063
          %v1815 = vunpack.c.l.b16 %v1064
          %v1816 = vunpack.c.h.b16 %v1064
          %v1817 = vunpack.c.l.b16 %v1065
          %v1818 = vunpack.c.h.b16 %v1065
          %v1819 = vunpack.c.l.b16 %v1066
          %v1820 = vunpack.c.h.b16 %v1066
          %v1821 = vunpack.c.l.b16 %v1067
          %v1822 = vunpack.c.h.b16 %v1067
          %v1823 = vunpack.c.l.b16 %v1068
          %v1824 = vunpack.c.h.b16 %v1068
          %v1825 = vunpack.c.l.b16 %v1069
          %v1826 = vunpack.c.h.b16 %v1069
          %v1827 = vunpack.c.l.b16 %v1070
          %v1828 = vunpack.c.h.b16 %v1070
          %v1829 = vunpack.c.l.b16 %v1071
          %v1830 = vunpack.c.h.b16 %v1071
          %v1831 = vunpack.c.l.b16 %v1072
          %v1832 = vunpack.c.h.b16 %v1072
          %v1833 = vunpack.c.l.b16 %v1073
          %v1834 = vunpack.c.h.b16 %v1073
          %v1835 = vunpack.c.l.b16 %v1074
          %v1836 = vunpack.c.h.b16 %v1074
          %v1837 = vunpack.c.l.b16 %v1075
          %v1838 = vunpack.c.h.b16 %v1075
          %v1839 = vunpack.c.l.b16 %v1076
          %v1840 = vunpack.c.h.b16 %v1076
          %v1841 = vunpack.c.l.b16 %v1077
          %v1842 = vunpack.c.h.b16 %v1077
          %v1843 = vunpack.c.l.b16 %v1078
          %v1844 = vunpack.c.h.b16 %v1078
          %v1845 = vunpack.c.l.b16 %v1079
          %v1846 = vunpack.c.h.b16 %v1079
          %v1847 = vunpack.c.l.b16 %v1080
          %v1848 = vunpack.c.h.b16 %v1080
          %v1849 = vunpack.c.l.b16 %v1081
          %v1850 = vunpack.c.h.b16 %v1081
          %v1851 = vpack.c.b16 %v1347, %v1339
          %v1852 = vpack.c.b16 %v1348, %v1340
          %v1853 = vpack.c.b16 %v1349, %v1341
          %v1854 = vpack.c.b16 %v1350, %v1342
          %v1855 = vpack.c.b16 %v1351, %v1343
          %v1856 = vpack.c.b16 %v1352, %v1344
          %v1857 = vpack.c.b16 %v1353, %v1345
          %v1858 = vpack.c.b16 %v1354, %v1346
          %v1859 = vpack.c.b16 %v1363, %v1355
          %v1860 = vpack.c.b16 %v1364, %v1356
          %v1861 = vpack.c.b16 %v1365, %v1357
          %v1862 = vpack.c.b16 %v1366, %v1358
          %v1863 = vpack.c.b16 %v1367, %v1359
          %v1864 = vpack.c.b16 %v1368, %v1360
          %v1865 = vpack.c.b16 %v1369, %v1361
          %v1866 = vpack.c.b16 %v1370, %v1362
          %v1867 = vpack.c.b16 %v1379, %v1371
          %v1868 = vpack.c.b16 %v1380, %v1372
          %v1869 = vpack.c.b16 %v1381, %v1373
          %v1870 = vpack.c.b16 %v1382, %v1374
          %v1871 = vpack.c.b16 %v1383, %v1375
          %v1872 = vpack.c.b16 %v1384, %v1376
          %v1873 = vpack.c.b16 %v1385, %v1377
          %v1874 = vpack.c.b16 %v1386, %v1378
          %v1875 = vpack.c.b16 %v1395, %v1387
          %v1876 = vpack.c.b16 %v1396, %v1388
          %v1877 = vpack.c.b16 %v1397, %v1389
          %v1878 = vpack.c.b16 %v1398, %v1390
          %v1879 = vpack.c.b16 %v1399, %v1391
          %v1880 = vpack.c.b16 %v1400, %v1392
          %v1881 = vpack.c.b16 %v1401, %v1393
          %v1882 = vpack.c.b16 %v1402, %v1394
          %v1883 = vpack.c.b16 %v1411, %v1403
          %v1884 = vpack.c.b16 %v1412, %v1404
          %v1885 = vpack.c.b16 %v1413, %v1405
          %v1886 = vpack.c.b16 %v1414, %v1406
          %v1887 = vpack.c.b16 %v1415, %v1407
          %v1888 = vpack.c.b16 %v1416, %v1408
          %v1889 = vpack.c.b16 %v1417, %v1409
          %v1890 = vpack.c.b16 %v1418, %v1410
          %v1891 = vpack.c.b16 %v1427, %v1419
          %v1892 = vpack.c.b16 %v1428, %v1420
          %v1893 = vpack.c.b16 %v1429, %v1421
          %v1894 = vpack.c.b16 %v1430, %v1422
          %v1895 = vpack.c.b16 %v1431, %v1423
          %v1896 = vpack.c.b16 %v1432, %v1424
          %v1897 = vpack.c.b16 %v1433, %v1425
          %v1898 = vpack.c.b16 %v1434, %v1426
          %v1899 = vpack.c.b16 %v1443, %v1435
          %v1900 = vpack.c.b16 %v1444, %v1436
          %v1901 = vpack.c.b16 %v1445, %v1437
          %v1902 = vpack.c.b16 %v1446, %v1438
          %v1903 = vpack.c.b16 %v1447, %v1439
          %v1904 = vpack.c.b16 %v1448, %v1440
          %v1905 = vpack.c.b16 %v1449, %v1441
          %v1906 = vpack.c.b16 %v1450, %v1442
          %v1907 = vpack.c.b16 %v1459, %v1451
          %v1908 = vpack.c.b16 %v1460, %v1452
          %v1909 = vpack.c.b16 %v1461, %v1453
          %v1910 = vpack.c.b16 %v1462, %v1454
          %v1911 = vpack.c.b16 %v1463, %v1455
          %v1912 = vpack.c.b16 %v1464, %v1456
          %v1913 = vpack.c.b16 %v1465, %v1457
          %v1914 = vpack.c.b16 %v1466, %v1458
          %v1915 = vpack.c.b16 %v1475, %v1467
          %v1916 = vpack.c.b16 %v1476, %v1468
          %v1917 = vpack.c.b16 %v1477, %v1469
          %v1918 = vpack.c.b16 %v1478, %v1470
          %v1919 = vpack.c.b16 %v1479, %v1471
          %v1920 = vpack.c.b16 %v1480, %v1472
          %v1921 = vpack.c.b16 %v1481, %v1473
          %v1922 = vpack.c.b16 %v1482, %v1474
          %v1923 = vpack.c.b16 %v1491, %v1483
          %v1924 = vpack.c.b16 %v1492, %v1484
          %v1925 = vpack.c.b16 %v1493, %v1485
          %v1926 = vpack.c.b16 %v1494, %v1486
          %v1927 = vpack.c.b16 %v1495, %v1487
          %v1928 = vpack.c.b16 %v1496, %v1488
          %v1929 = vpack.c.b16 %v1497, %v1489
          %v1930 = vpack.c.b16 %v1498, %v1490
          %v1931 = vpack.c.b16 %v1507, %v1499
          %v1932 = vpack.c.b16 %v1508, %v1500
          %v1933 = vpack.c.b16 %v1509, %v1501
          %v1934 = vpack.c.b16 %v1510, %v1502
          %v1935 = vpack.c.b16 %v1511, %v1503
          %v1936 = vpack.c.b16 %v1512, %v1504
          %v1937 = vpack.c.b16 %v1513, %v1505
          %v1938 = vpack.c.b16 %v1514, %v1506
          %v1939 = vpack.c.b16 %v1523, %v1515
          %v1940 = vpack.c.b16 %v1524, %v1516
          %v1941 = vpack.c.b16 %v1525, %v1517
          %v1942 = vpack.c.b16 %v1526, %v1518
          %v1943 = vpack.c.b16 %v1527, %v1519
          %v1944 = vpack.c.b16 %v1528, %v1520
          %v1945 = vpack.c.b16 %v1529, %v1521
          %v1946 = vpack.c.b16 %v1530, %v1522
          %v1947 = vpack.c.b16 %v1539, %v1531
          %v1948 = vpack.c.b16 %v1540, %v1532
          %v1949 = vpack.c.b16 %v1541, %v1533
          %v1950 = vpack.c.b16 %v1542, %v1534
          %v1951 = vpack.c.b16 %v1543, %v1535
          %v1952 = vpack.c.b16 %v1544, %v1536
          %v1953 = vpack.c.b16 %v1545, %v1537
          %v1954 = vpack.c.b16 %v1546, %v1538
          %v1955 = vpack.c.b16 %v1555, %v1547
          %v1956 = vpack.c.b16 %v1556, %v1548
          %v1957 = vpack.c.b16 %v1557, %v1549
          %v1958 = vpack.c.b16 %v1558, %v1550
          %v1959 = vpack.c.b16 %v1559, %v1551
          %v1960 = vpack.c.b16 %v1560, %v1552
          %v1961 = vpack.c.b16 %v1561, %v1553
          %v1962 = vpack.c.b16 %v1562, %v1554
          %v1963 = vpack.c.b16 %v1571, %v1563
          %v1964 = vpack.c.b16 %v1572, %v1564
          %v1965 = vpack.c.b16 %v1573, %v1565
          %v1966 = vpack.c.b16 %v1574, %v1566
          %v1967 = vpack.c.b16 %v1575, %v1567
          %v1968 = vpack.c.b16 %v1576, %v1568
          %v1969 = vpack.c.b16 %v1577, %v1569
          %v1970 = vpack.c.b16 %v1578, %v1570
          %v1971 = vpack.c.b16 %v1587, %v1579
          %v1972 = vpack.c.b16 %v1588, %v1580
          %v1973 = vpack.c.b16 %v1589, %v1581
          %v1974 = vpack.c.b16 %v1590, %v1582
          %v1975 = vpack.c.b16 %v1591, %v1583
          %v1976 = vpack.c.b16 %v1592, %v1584
          %v1977 = vpack.c.b16 %v1593, %v1585
          %v1978 = vpack.c.b16 %v1594, %v1586
          %v1979 = vpack.c.b16 %v1603, %v1595
          %v1980 = vpack.c.b16 %v1604, %v1596
          %v1981 = vpack.c.b16 %v1605, %v1597
          %v1982 = vpack.c.b16 %v1606, %v1598
          %v1983 = vpack.c.b16 %v1607, %v1599
          %v1984 = vpack.c.b16 %v1608, %v1600
          %v1985 = vpack.c.b16 %v1609, %v1601
          %v1986 = vpack.c.b16 %v1610, %v1602
          %v1987 = vpack.c.b16 %v1619, %v1611
          %v1988 = vpack.c.b16 %v1620, %v1612
          %v1989 = vpack.c.b16 %v1621, %v1613
          %v1990 = vpack.c.b16 %v1622, %v1614
          %v1991 = vpack.c.b16 %v1623, %v1615
          %v1992 = vpack.c.b16 %v1624, %v1616
          %v1993 = vpack.c.b16 %v1625, %v1617
          %v1994 = vpack.c.b16 %v1626, %v1618
          %v1995 = vpack.c.b16 %v1635, %v1627
          %v1996 = vpack.c.b16 %v1636, %v1628
          %v1997 = vpack.c.b16 %v1637, %v1629
          %v1998 = vpack.c.b16 %v1638, %v1630
          %v1999 = vpack.c.b16 %v1639, %v1631
          %v2000 = vpack.c.b16 %v1640, %v1632
          %v2001 = vpack.c.b16 %v1641, %v1633
          %v2002 = vpack.c.b16 %v1642, %v1634
          %v2003 = vpack.c.b16 %v1651, %v1643
          %v2004 = vpack.c.b16 %v1652, %v1644
          %v2005 = vpack.c.b16 %v1653, %v1645
          %v2006 = vpack.c.b16 %v1654, %v1646
          %v2007 = vpack.c.b16 %v1655, %v1647
          %v2008 = vpack.c.b16 %v1656, %v1648
          %v2009 = vpack.c.b16 %v1657, %v1649
          %v2010 = vpack.c.b16 %v1658, %v1650
          %v2011 = vpack.c.b16 %v1667, %v1659
          %v2012 = vpack.c.b16 %v1668, %v1660
          %v2013 = vpack.c.b16 %v1669, %v1661
          %v2014 = vpack.c.b16 %v1670, %v1662
          %v2015 = vpack.c.b16 %v1671, %v1663
          %v2016 = vpack.c.b16 %v1672, %v1664
          %v2017 = vpack.c.b16 %v1673, %v1665
          %v2018 = vpack.c.b16 %v1674, %v1666
          %v2019 = vpack.c.b16 %v1683, %v1675
          %v2020 = vpack.c.b16 %v1684, %v1676
          %v2021 = vpack.c.b16 %v1685, %v1677
          %v2022 = vpack.c.b16 %v1686, %v1678
          %v2023 = vpack.c.b16 %v1687, %v1679
          %v2024 = vpack.c.b16 %v1688, %v1680
          %v2025 = vpack.c.b16 %v1689, %v1681
          %v2026 = vpack.c.b16 %v1690, %v1682
          %v2027 = vpack.c.b16 %v1699, %v1691
          %v2028 = vpack.c.b16 %v1700, %v1692
          %v2029 = vpack.c.b16 %v1701, %v1693
          %v2030 = vpack.c.b16 %v1702, %v1694
          %v2031 = vpack.c.b16 %v1703, %v1695
          %v2032 = vpack.c.b16 %v1704, %v1696
          %v2033 = vpack.c.b16 %v1705, %v1697
          %v2034 = vpack.c.b16 %v1706, %v1698
          %v2035 = vpack.c.b16 %v1715, %v1707
          %v2036 = vpack.c.b16 %v1716, %v1708
          %v2037 = vpack.c.b16 %v1717, %v1709
          %v2038 = vpack.c.b16 %v1718, %v1710
          %v2039 = vpack.c.b16 %v1719, %v1711
          %v2040 = vpack.c.b16 %v1720, %v1712
          %v2041 = vpack.c.b16 %v1721, %v1713
          %v2042 = vpack.c.b16 %v1722, %v1714
          %v2043 = vpack.c.b16 %v1731, %v1723
          %v2044 = vpack.c.b16 %v1732, %v1724
          %v2045 = vpack.c.b16 %v1733, %v1725
          %v2046 = vpack.c.b16 %v1734, %v1726
          %v2047 = vpack.c.b16 %v1735, %v1727
          %v2048 = vpack.c.b16 %v1736, %v1728
          %v2049 = vpack.c.b16 %v1737, %v1729
          %v2050 = vpack.c.b16 %v1738, %v1730
          %v2051 = vpack.c.b16 %v1747, %v1739
          %v2052 = vpack.c.b16 %v1748, %v1740
          %v2053 = vpack.c.b16 %v1749, %v1741
          %v2054 = vpack.c.b16 %v1750, %v1742
          %v2055 = vpack.c.b16 %v1751, %v1743
          %v2056 = vpack.c.b16 %v1752, %v1744
          %v2057 = vpack.c.b16 %v1753, %v1745
          %v2058 = vpack.c.b16 %v1754, %v1746
          %v2059 = vpack.c.b16 %v1763, %v1755
          %v2060 = vpack.c.b16 %v1764, %v1756
          %v2061 = vpack.c.b16 %v1765, %v1757
          %v2062 = vpack.c.b16 %v1766, %v1758
          %v2063 = vpack.c.b16 %v1767, %v1759
          %v2064 = vpack.c.b16 %v1768, %v1760
          %v2065 = vpack.c.b16 %v1769, %v1761
          %v2066 = vpack.c.b16 %v1770, %v1762
          %v2067 = vpack.c.b16 %v1779, %v1771
          %v2068 = vpack.c.b16 %v1780, %v1772
          %v2069 = vpack.c.b16 %v1781, %v1773
          %v2070 = vpack.c.b16 %v1782, %v1774
          %v2071 = vpack.c.b16 %v1783, %v1775
          %v2072 = vpack.c.b16 %v1784, %v1776
          %v2073 = vpack.c.b16 %v1785, %v1777
          %v2074 = vpack.c.b16 %v1786, %v1778
          %v2075 = vpack.c.b16 %v1795, %v1787
          %v2076 = vpack.c.b16 %v1796, %v1788
          %v2077 = vpack.c.b16 %v1797, %v1789
          %v2078 = vpack.c.b16 %v1798, %v1790
          %v2079 = vpack.c.b16 %v1799, %v1791
          %v2080 = vpack.c.b16 %v1800, %v1792
          %v2081 = vpack.c.b16 %v1801, %v1793
          %v2082 = vpack.c.b16 %v1802, %v1794
          %v2083 = vpack.c.b16 %v1811, %v1803
          %v2084 = vpack.c.b16 %v1812, %v1804
          %v2085 = vpack.c.b16 %v1813, %v1805
          %v2086 = vpack.c.b16 %v1814, %v1806
          %v2087 = vpack.c.b16 %v1815, %v1807
          %v2088 = vpack.c.b16 %v1816, %v1808
          %v2089 = vpack.c.b16 %v1817, %v1809
          %v2090 = vpack.c.b16 %v1818, %v1810
          %v2091 = vpack.c.b16 %v1827, %v1819
          %v2092 = vpack.c.b16 %v1828, %v1820
          %v2093 = vpack.c.b16 %v1829, %v1821
          %v2094 = vpack.c.b16 %v1830, %v1822
          %v2095 = vpack.c.b16 %v1831, %v1823
          %v2096 = vpack.c.b16 %v1832, %v1824
          %v2097 = vpack.c.b16 %v1833, %v1825
          %v2098 = vpack.c.b16 %v1834, %v1826
          %v2099 = vpack.c.b16 %v1843, %v1835
          %v2100 = vpack.c.b16 %v1844, %v1836
          %v2101 = vpack.c.b16 %v1845, %v1837
          %v2102 = vpack.c.b16 %v1846, %v1838
          %v2103 = vpack.c.b16 %v1847, %v1839
          %v2104 = vpack.c.b16 %v1848, %v1840
          %v2105 = vpack.c.b16 %v1849, %v1841
          %v2106 = vpack.c.b16 %v1850, %v1842
          %v2364 = vlaneseq
          %v2365 = vshrl.u32 %v2364, 7
          %v2366 = vsub.s32 0, %v2365
          %v2367 = vrot.slane %v1082, %v2366
          %v2368 = vlaneseq
          %v2369 = vshrl.u32 %v2368, 7
          %v2370 = vsub.s32 1, %v2369
          %v2371 = vrot.slane %v1082, %v2370
          %v2372 = vlaneseq
          %v2373 = vshrl.u32 %v2372, 7
          %v2374 = vsub.s32 2, %v2373
          %v2375 = vrot.slane %v1082, %v2374
          %v2376 = vlaneseq
          %v2377 = vshrl.u32 %v2376, 7
          %v2378 = vsub.s32 3, %v2377
          %v2379 = vrot.slane %v1082, %v2378
          %v2380 = vlaneseq
          %v2381 = vshrl.u32 %v2380, 7
          %v2382 = vsub.s32 4, %v2381
          %v2383 = vrot.slane %v1082, %v2382
          %v2384 = vlaneseq
          %v2385 = vshrl.u32 %v2384, 7
          %v2386 = vsub.s32 5, %v2385
          %v2387 = vrot.slane %v1082, %v2386
          %v2388 = vlaneseq
          %v2389 = vshrl.u32 %v2388, 7
          %v2390 = vsub.s32 6, %v2389
          %v2391 = vrot.slane %v1082, %v2390
          %v2392 = vlaneseq
          %v2393 = vshrl.u32 %v2392, 7
          %v2394 = vsub.s32 7, %v2393
          %v2395 = vrot.slane %v1082, %v2394
          %2404 = vmatprep.subr.bf16.mxu0 %v1908
          %2405 = vmatpush1.bf16.msra.mxu0 %v1907
          %2406 = vmatprep.subr.bf16.mxu0 %v1900
          %2407 = vmatpush1.bf16.msra.mxu0 %v1899
          %2408 = vmatprep.subr.bf16.mxu0 %v1892
          %2409 = vmatpush1.bf16.msra.mxu0 %v1891
          %2410 = vmatprep.subr.bf16.mxu0 %v1884
          %2411 = vmatpush1.bf16.msra.mxu0 %v1883
          %2412 = vmatprep.subr.bf16.mxu0 %v1876
          %2413 = vmatpush1.bf16.msra.mxu0 %v1875
          %2414 = vmatprep.subr.bf16.mxu0 %v1868
          %2415 = vmatpush1.bf16.msra.mxu0 %v1867
          %2416 = vmatprep.subr.bf16.mxu0 %v1860
          %2417 = vmatpush1.bf16.msra.mxu0 %v1859
          %2418 = vmatprep.subr.bf16.mxu0 %v1852
          %2419 = vmatpush1.bf16.msra.mxu0 %v1851
          %2420 = vmatprep.subr.bf16.mxu0 %v1972
          %2421 = vmatpush2.bf16.msra.mxu0 %v1971
          %2422 = vmatprep.subr.bf16.mxu0 %v1964
          %2423 = vmatpush2.bf16.msra.mxu0 %v1963
          %2424 = vmatprep.subr.bf16.mxu0 %v1956
          %2425 = vmatpush2.bf16.msra.mxu0 %v1955
          %2426 = vmatprep.subr.bf16.mxu0 %v1948
          %2427 = vmatpush2.bf16.msra.mxu0 %v1947
          %2428 = vmatprep.subr.bf16.mxu0 %v1940
          %2429 = vmatpush2.bf16.msra.mxu0 %v1939
          %2430 = vmatprep.subr.bf16.mxu0 %v1932
          %2431 = vmatpush2.bf16.msra.mxu0 %v1931
          %2432 = vmatprep.subr.bf16.mxu0 %v1924
          %2433 = vmatpush2.bf16.msra.mxu0 %v1923
          %2434 = vmatprep.subr.bf16.mxu0 %v1916
          %2435 = vmatpush2.bf16.msra.mxu0 %v1915
          %2436 = vmatprep.mubr.bf16.mxu0 %v823
          %2437 = vmatmul.mubr.bf16.gmra.mxu0 %v822
          %v2438 = vpop.f32.mrf.mxu0
          %v2439 = vadd.f32 %v2367, %v2438
          %v2440 = vpop.f32.mrf.mxu0
          %v2441 = vadd.f32 %v2371, %v2440
          %v2442 = vpop.f32.mrf.mxu0
          %v2443 = vpop.f32.mrf.mxu0
          %2444 = vdwg.mxu0
          %2445 = vmatprep.subr.bf16.mxu0 %v2036
          %2446 = vmatpush1.bf16.msra.mxu0 %v2035
          %2447 = vmatprep.subr.bf16.mxu0 %v2028
          %2448 = vmatpush1.bf16.msra.mxu0 %v2027
          %2449 = vmatprep.subr.bf16.mxu0 %v2020
          %2450 = vmatpush1.bf16.msra.mxu0 %v2019
          %2451 = vmatprep.subr.bf16.mxu0 %v2012
          %2452 = vmatpush1.bf16.msra.mxu0 %v2011
          %2453 = vmatprep.subr.bf16.mxu0 %v2004
          %2454 = vmatpush1.bf16.msra.mxu0 %v2003
          %2455 = vmatprep.subr.bf16.mxu0 %v1996
          %2456 = vmatpush1.bf16.msra.mxu0 %v1995
          %2457 = vmatprep.subr.bf16.mxu0 %v1988
          %2458 = vmatpush1.bf16.msra.mxu0 %v1987
          %2459 = vmatprep.subr.bf16.mxu0 %v1980
          %2460 = vmatpush1.bf16.msra.mxu0 %v1979
          %2461 = vmatprep.subr.bf16.mxu0 %v2100
          %2462 = vmatpush2.bf16.msra.mxu0 %v2099
          %2463 = vmatprep.subr.bf16.mxu0 %v2092
          %2464 = vmatpush2.bf16.msra.mxu0 %v2091
          %2465 = vmatprep.subr.bf16.mxu0 %v2084
          %2466 = vmatpush2.bf16.msra.mxu0 %v2083
          %2467 = vmatprep.subr.bf16.mxu0 %v2076
          %2468 = vmatpush2.bf16.msra.mxu0 %v2075
          %2469 = vmatprep.subr.bf16.mxu0 %v2068
          %2470 = vmatpush2.bf16.msra.mxu0 %v2067
          %2471 = vmatprep.subr.bf16.mxu0 %v2060
          %2472 = vmatpush2.bf16.msra.mxu0 %v2059
          %2473 = vmatprep.subr.bf16.mxu0 %v2052
          %2474 = vmatpush2.bf16.msra.mxu0 %v2051
          %2475 = vmatprep.subr.bf16.mxu0 %v2044
          %2476 = vmatpush2.bf16.msra.mxu0 %v2043
          %2477 = vmatprep.mubr.bf16.mxu0 %v825
          %2478 = vmatmul.mubr.bf16.gmra.mxu0 %v824
          %v2479 = vpop.f32.mrf.mxu0
          %v2480 = vadd.f32 %v2439, %v2479
          %v2481 = vpop.f32.mrf.mxu0
          %v2482 = vadd.f32 %v2441, %v2481
          %v2483 = vpop.f32.mrf.mxu0
          %v2484 = vpop.f32.mrf.mxu0
          %2485 = vdwg.mxu0
          %2486 = vmatprep.subr.bf16.mxu0 %v1910
          %2487 = vmatpush1.bf16.msra.mxu0 %v1909
          %2488 = vmatprep.subr.bf16.mxu0 %v1902
          %2489 = vmatpush1.bf16.msra.mxu0 %v1901
          %2490 = vmatprep.subr.bf16.mxu0 %v1894
          %2491 = vmatpush1.bf16.msra.mxu0 %v1893
          %2492 = vmatprep.subr.bf16.mxu0 %v1886
          %2493 = vmatpush1.bf16.msra.mxu0 %v1885
          %2494 = vmatprep.subr.bf16.mxu0 %v1878
          %2495 = vmatpush1.bf16.msra.mxu0 %v1877
          %2496 = vmatprep.subr.bf16.mxu0 %v1870
          %2497 = vmatpush1.bf16.msra.mxu0 %v1869
          %2498 = vmatprep.subr.bf16.mxu0 %v1862
          %2499 = vmatpush1.bf16.msra.mxu0 %v1861
          %2500 = vmatprep.subr.bf16.mxu0 %v1854
          %2501 = vmatpush1.bf16.msra.mxu0 %v1853
          %2502 = vmatprep.subr.bf16.mxu0 %v1974
          %2503 = vmatpush2.bf16.msra.mxu0 %v1973
          %2504 = vmatprep.subr.bf16.mxu0 %v1966
          %2505 = vmatpush2.bf16.msra.mxu0 %v1965
          %2506 = vmatprep.subr.bf16.mxu0 %v1958
          %2507 = vmatpush2.bf16.msra.mxu0 %v1957
          %2508 = vmatprep.subr.bf16.mxu0 %v1950
          %2509 = vmatpush2.bf16.msra.mxu0 %v1949
          %2510 = vmatprep.subr.bf16.mxu0 %v1942
          %2511 = vmatpush2.bf16.msra.mxu0 %v1941
          %2512 = vmatprep.subr.bf16.mxu0 %v1934
          %2513 = vmatpush2.bf16.msra.mxu0 %v1933
          %2514 = vmatprep.subr.bf16.mxu0 %v1926
          %2515 = vmatpush2.bf16.msra.mxu0 %v1925
          %2516 = vmatprep.subr.bf16.mxu0 %v1918
          %2517 = vmatpush2.bf16.msra.mxu0 %v1917
          %2518 = vmatprep.mubr.bf16.mxu0 %v823
          %2519 = vmatmul.mubr.bf16.gmra.mxu0 %v822
          %v2520 = vpop.f32.mrf.mxu0
          %v2521 = vadd.f32 %v2375, %v2520
          %v2522 = vpop.f32.mrf.mxu0
          %v2523 = vadd.f32 %v2379, %v2522
          %v2524 = vpop.f32.mrf.mxu0
          %v2525 = vpop.f32.mrf.mxu0
          %2526 = vdwg.mxu0
          %2527 = vmatprep.subr.bf16.mxu0 %v2038
          %2528 = vmatpush1.bf16.msra.mxu0 %v2037
          %2529 = vmatprep.subr.bf16.mxu0 %v2030
          %2530 = vmatpush1.bf16.msra.mxu0 %v2029
          %2531 = vmatprep.subr.bf16.mxu0 %v2022
          %2532 = vmatpush1.bf16.msra.mxu0 %v2021
          %2533 = vmatprep.subr.bf16.mxu0 %v2014
          %2534 = vmatpush1.bf16.msra.mxu0 %v2013
          %2535 = vmatprep.subr.bf16.mxu0 %v2006
          %2536 = vmatpush1.bf16.msra.mxu0 %v2005
          %2537 = vmatprep.subr.bf16.mxu0 %v1998
          %2538 = vmatpush1.bf16.msra.mxu0 %v1997
          %2539 = vmatprep.subr.bf16.mxu0 %v1990
          %2540 = vmatpush1.bf16.msra.mxu0 %v1989
          %2541 = vmatprep.subr.bf16.mxu0 %v1982
          %2542 = vmatpush1.bf16.msra.mxu0 %v1981
          %2543 = vmatprep.subr.bf16.mxu0 %v2102
          %2544 = vmatpush2.bf16.msra.mxu0 %v2101
          %2545 = vmatprep.subr.bf16.mxu0 %v2094
          %2546 = vmatpush2.bf16.msra.mxu0 %v2093
          %2547 = vmatprep.subr.bf16.mxu0 %v2086
          %2548 = vmatpush2.bf16.msra.mxu0 %v2085
          %2549 = vmatprep.subr.bf16.mxu0 %v2078
          %2550 = vmatpush2.bf16.msra.mxu0 %v2077
          %2551 = vmatprep.subr.bf16.mxu0 %v2070
          %2552 = vmatpush2.bf16.msra.mxu0 %v2069
          %2553 = vmatprep.subr.bf16.mxu0 %v2062
          %2554 = vmatpush2.bf16.msra.mxu0 %v2061
          %2555 = vmatprep.subr.bf16.mxu0 %v2054
          %2556 = vmatpush2.bf16.msra.mxu0 %v2053
          %2557 = vmatprep.subr.bf16.mxu0 %v2046
          %2558 = vmatpush2.bf16.msra.mxu0 %v2045
          %2559 = vmatprep.mubr.bf16.mxu0 %v825
          %2560 = vmatmul.mubr.bf16.gmra.mxu0 %v824
          %v2561 = vpop.f32.mrf.mxu0
          %v2562 = vadd.f32 %v2521, %v2561
          %v2563 = vpop.f32.mrf.mxu0
          %v2564 = vadd.f32 %v2523, %v2563
          %v2565 = vpop.f32.mrf.mxu0
          %v2566 = vpop.f32.mrf.mxu0
          %2567 = vdwg.mxu0
          %2568 = vmatprep.subr.bf16.mxu0 %v1912
          %2569 = vmatpush1.bf16.msra.mxu0 %v1911
          %2570 = vmatprep.subr.bf16.mxu0 %v1904
          %2571 = vmatpush1.bf16.msra.mxu0 %v1903
          %2572 = vmatprep.subr.bf16.mxu0 %v1896
          %2573 = vmatpush1.bf16.msra.mxu0 %v1895
          %2574 = vmatprep.subr.bf16.mxu0 %v1888
          %2575 = vmatpush1.bf16.msra.mxu0 %v1887
          %2576 = vmatprep.subr.bf16.mxu0 %v1880
          %2577 = vmatpush1.bf16.msra.mxu0 %v1879
          %2578 = vmatprep.subr.bf16.mxu0 %v1872
          %2579 = vmatpush1.bf16.msra.mxu0 %v1871
          %2580 = vmatprep.subr.bf16.mxu0 %v1864
          %2581 = vmatpush1.bf16.msra.mxu0 %v1863
          %2582 = vmatprep.subr.bf16.mxu0 %v1856
          %2583 = vmatpush1.bf16.msra.mxu0 %v1855
          %2584 = vmatprep.subr.bf16.mxu0 %v1976
          %2585 = vmatpush2.bf16.msra.mxu0 %v1975
          %2586 = vmatprep.subr.bf16.mxu0 %v1968
          %2587 = vmatpush2.bf16.msra.mxu0 %v1967
          %2588 = vmatprep.subr.bf16.mxu0 %v1960
          %2589 = vmatpush2.bf16.msra.mxu0 %v1959
          %2590 = vmatprep.subr.bf16.mxu0 %v1952
          %2591 = vmatpush2.bf16.msra.mxu0 %v1951
          %2592 = vmatprep.subr.bf16.mxu0 %v1944
          %2593 = vmatpush2.bf16.msra.mxu0 %v1943
          %2594 = vmatprep.subr.bf16.mxu0 %v1936
          %2595 = vmatpush2.bf16.msra.mxu0 %v1935
          %2596 = vmatprep.subr.bf16.mxu0 %v1928
          %2597 = vmatpush2.bf16.msra.mxu0 %v1927
          %2598 = vmatprep.subr.bf16.mxu0 %v1920
          %2599 = vmatpush2.bf16.msra.mxu0 %v1919
          %2600 = vmatprep.mubr.bf16.mxu0 %v823
          %2601 = vmatmul.mubr.bf16.gmra.mxu0 %v822
          %v2602 = vpop.f32.mrf.mxu0
          %v2603 = vadd.f32 %v2383, %v2602
          %v2604 = vpop.f32.mrf.mxu0
          %v2605 = vadd.f32 %v2387, %v2604
          %v2606 = vpop.f32.mrf.mxu0
          %v2607 = vpop.f32.mrf.mxu0
          %2608 = vdwg.mxu0
          %2609 = vmatprep.subr.bf16.mxu0 %v2040
          %2610 = vmatpush1.bf16.msra.mxu0 %v2039
          %2611 = vmatprep.subr.bf16.mxu0 %v2032
          %2612 = vmatpush1.bf16.msra.mxu0 %v2031
          %2613 = vmatprep.subr.bf16.mxu0 %v2024
          %2614 = vmatpush1.bf16.msra.mxu0 %v2023
          %2615 = vmatprep.subr.bf16.mxu0 %v2016
          %2616 = vmatpush1.bf16.msra.mxu0 %v2015
          %2617 = vmatprep.subr.bf16.mxu0 %v2008
          %2618 = vmatpush1.bf16.msra.mxu0 %v2007
          %2619 = vmatprep.subr.bf16.mxu0 %v2000
          %2620 = vmatpush1.bf16.msra.mxu0 %v1999
          %2621 = vmatprep.subr.bf16.mxu0 %v1992
          %2622 = vmatpush1.bf16.msra.mxu0 %v1991
          %2623 = vmatprep.subr.bf16.mxu0 %v1984
          %2624 = vmatpush1.bf16.msra.mxu0 %v1983
          %2625 = vmatprep.subr.bf16.mxu0 %v2104
          %2626 = vmatpush2.bf16.msra.mxu0 %v2103
          %2627 = vmatprep.subr.bf16.mxu0 %v2096
          %2628 = vmatpush2.bf16.msra.mxu0 %v2095
          %2629 = vmatprep.subr.bf16.mxu0 %v2088
          %2630 = vmatpush2.bf16.msra.mxu0 %v2087
          %2631 = vmatprep.subr.bf16.mxu0 %v2080
          %2632 = vmatpush2.bf16.msra.mxu0 %v2079
          %2633 = vmatprep.subr.bf16.mxu0 %v2072
          %2634 = vmatpush2.bf16.msra.mxu0 %v2071
          %2635 = vmatprep.subr.bf16.mxu0 %v2064
          %2636 = vmatpush2.bf16.msra.mxu0 %v2063
          %2637 = vmatprep.subr.bf16.mxu0 %v2056
          %2638 = vmatpush2.bf16.msra.mxu0 %v2055
          %2639 = vmatprep.subr.bf16.mxu0 %v2048
          %2640 = vmatpush2.bf16.msra.mxu0 %v2047
          %2641 = vmatprep.mubr.bf16.mxu0 %v825
          %2642 = vmatmul.mubr.bf16.gmra.mxu0 %v824
          %v2643 = vpop.f32.mrf.mxu0
          %v2644 = vadd.f32 %v2603, %v2643
          %v2645 = vpop.f32.mrf.mxu0
          %v2646 = vadd.f32 %v2605, %v2645
          %v2647 = vpop.f32.mrf.mxu0
          %v2648 = vpop.f32.mrf.mxu0
          %2649 = vdwg.mxu0
          %2650 = vmatprep.subr.bf16.mxu0 %v1914
          %2651 = vmatpush1.bf16.msra.mxu0 %v1913
          %2652 = vmatprep.subr.bf16.mxu0 %v1906
          %2653 = vmatpush1.bf16.msra.mxu0 %v1905
          %2654 = vmatprep.subr.bf16.mxu0 %v1898
          %2655 = vmatpush1.bf16.msra.mxu0 %v1897
          %2656 = vmatprep.subr.bf16.mxu0 %v1890
          %2657 = vmatpush1.bf16.msra.mxu0 %v1889
          %2658 = vmatprep.subr.bf16.mxu0 %v1882
          %2659 = vmatpush1.bf16.msra.mxu0 %v1881
          %2660 = vmatprep.subr.bf16.mxu0 %v1874
          %2661 = vmatpush1.bf16.msra.mxu0 %v1873
          %2662 = vmatprep.subr.bf16.mxu0 %v1866
          %2663 = vmatpush1.bf16.msra.mxu0 %v1865
          %2664 = vmatprep.subr.bf16.mxu0 %v1858
          %2665 = vmatpush1.bf16.msra.mxu0 %v1857
          %2666 = vmatprep.subr.bf16.mxu0 %v1978
          %2667 = vmatpush2.bf16.msra.mxu0 %v1977
          %2668 = vmatprep.subr.bf16.mxu0 %v1970
          %2669 = vmatpush2.bf16.msra.mxu0 %v1969
          %2670 = vmatprep.subr.bf16.mxu0 %v1962
          %2671 = vmatpush2.bf16.msra.mxu0 %v1961
          %2672 = vmatprep.subr.bf16.mxu0 %v1954
          %2673 = vmatpush2.bf16.msra.mxu0 %v1953
          %2674 = vmatprep.subr.bf16.mxu0 %v1946
          %2675 = vmatpush2.bf16.msra.mxu0 %v1945
          %2676 = vmatprep.subr.bf16.mxu0 %v1938
          %2677 = vmatpush2.bf16.msra.mxu0 %v1937
          %2678 = vmatprep.subr.bf16.mxu0 %v1930
          %2679 = vmatpush2.bf16.msra.mxu0 %v1929
          %2680 = vmatprep.subr.bf16.mxu0 %v1922
          %2681 = vmatpush2.bf16.msra.mxu0 %v1921
          %2682 = vmatprep.mubr.bf16.mxu0 %v823
          %2683 = vmatmul.mubr.bf16.gmra.mxu0 %v822
          %v2684 = vpop.f32.mrf.mxu0
          %v2685 = vadd.f32 %v2391, %v2684
          %v2686 = vpop.f32.mrf.mxu0
          %v2687 = vadd.f32 %v2395, %v2686
          %v2688 = vpop.f32.mrf.mxu0
          %v2689 = vpop.f32.mrf.mxu0
          %2690 = vdwg.mxu0
          %2691 = vmatprep.subr.bf16.mxu0 %v2042
          %2692 = vmatpush1.bf16.msra.mxu0 %v2041
          %2693 = vmatprep.subr.bf16.mxu0 %v2034
          %2694 = vmatpush1.bf16.msra.mxu0 %v2033
          %2695 = vmatprep.subr.bf16.mxu0 %v2026
          %2696 = vmatpush1.bf16.msra.mxu0 %v2025
          %2697 = vmatprep.subr.bf16.mxu0 %v2018
          %2698 = vmatpush1.bf16.msra.mxu0 %v2017
          %2699 = vmatprep.subr.bf16.mxu0 %v2010
          %2700 = vmatpush1.bf16.msra.mxu0 %v2009
          %2701 = vmatprep.subr.bf16.mxu0 %v2002
          %2702 = vmatpush1.bf16.msra.mxu0 %v2001
          %2703 = vmatprep.subr.bf16.mxu0 %v1994
          %2704 = vmatpush1.bf16.msra.mxu0 %v1993
          %2705 = vmatprep.subr.bf16.mxu0 %v1986
          %2706 = vmatpush1.bf16.msra.mxu0 %v1985
          %2707 = vmatprep.subr.bf16.mxu0 %v2106
          %2708 = vmatpush2.bf16.msra.mxu0 %v2105
          %2709 = vmatprep.subr.bf16.mxu0 %v2098
          %2710 = vmatpush2.bf16.msra.mxu0 %v2097
          %2711 = vmatprep.subr.bf16.mxu0 %v2090
          %2712 = vmatpush2.bf16.msra.mxu0 %v2089
          %2713 = vmatprep.subr.bf16.mxu0 %v2082
          %2714 = vmatpush2.bf16.msra.mxu0 %v2081
          %2715 = vmatprep.subr.bf16.mxu0 %v2074
          %2716 = vmatpush2.bf16.msra.mxu0 %v2073
          %2717 = vmatprep.subr.bf16.mxu0 %v2066
          %2718 = vmatpush2.bf16.msra.mxu0 %v2065
          %2719 = vmatprep.subr.bf16.mxu0 %v2058
          %2720 = vmatpush2.bf16.msra.mxu0 %v2057
          %2721 = vmatprep.subr.bf16.mxu0 %v2050
          %2722 = vmatpush2.bf16.msra.mxu0 %v2049
          %2723 = vmatprep.mubr.bf16.mxu0 %v825
          %2724 = vmatmul.mubr.bf16.gmra.mxu0 %v824
          %v2725 = vpop.f32.mrf.mxu0
          %v2726 = vadd.f32 %v2685, %v2725
          %v2727 = vpop.f32.mrf.mxu0
          %v2728 = vadd.f32 %v2687, %v2727
          %v2729 = vpop.f32.mrf.mxu0
          %v2730 = vpop.f32.mrf.mxu0
          %2731 = vdwg.mxu0
          %v2732 = vpack.c.bf16 %v2480, %v2480
          %v2733 = vpack.c.bf16 %v2482, %v2482
          %v2734 = vpack.c.bf16 %v2562, %v2562
          %v2735 = vpack.c.bf16 %v2564, %v2564
          %v2736 = vpack.c.bf16 %v2644, %v2644
          %v2737 = vpack.c.bf16 %v2646, %v2646
          %v2738 = vpack.c.bf16 %v2726, %v2726
          %v2739 = vpack.c.bf16 %v2728, %v2728
          %v2740 = vld [vmem:[%s7] sm:$0xf]
          %v2741 = vld [vmem:[%s7 + $0x4] sm:$0xf]
          %v2742 = vld [vmem:[%s7 + $0x8] sm:$0xf]
          %v2743 = vld [vmem:[%s7 + $0xc] sm:$0xf]
          %v2744 = vld [vmem:[%s7 + $0x10] sm:$0xf]
          %v2745 = vld [vmem:[%s7 + $0x14] sm:$0xf]
          %v2746 = vld [vmem:[%s7 + $0x18] sm:$0xf]
          %v2747 = vld [vmem:[%s7 + $0x1c] sm:$0xf]
          %v2748 = vld [vmem:[%s7 + $0x20] sm:$0xf]
          %v2749 = vld [vmem:[%s7 + $0x24] sm:$0xf]
          %v2750 = vld [vmem:[%s7 + $0x28] sm:$0xf]
          %v2751 = vld [vmem:[%s7 + $0x2c] sm:$0xf]
          %v2752 = vld [vmem:[%s7 + $0x30] sm:$0xf]
          %v2753 = vld [vmem:[%s7 + $0x34] sm:$0xf]
          %v2754 = vld [vmem:[%s7 + $0x38] sm:$0xf]
          %v2755 = vld [vmem:[%s7 + $0x3c] sm:$0xf]
          %v2756 = vld [vmem:[%s7 + $0x40] sm:$0xf]
          %v2757 = vld [vmem:[%s7 + $0x44] sm:$0xf]
          %v2758 = vld [vmem:[%s7 + $0x48] sm:$0xf]
          %v2759 = vld [vmem:[%s7 + $0x4c] sm:$0xf]
          %v2760 = vld [vmem:[%s7 + $0x50] sm:$0xf]
          %v2761 = vld [vmem:[%s7 + $0x54] sm:$0xf]
          %v2762 = vld [vmem:[%s7 + $0x58] sm:$0xf]
          %v2763 = vld [vmem:[%s7 + $0x5c] sm:$0xf]
          %v2764 = vld [vmem:[%s7 + $0x60] sm:$0xf]
          %v2765 = vld [vmem:[%s7 + $0x64] sm:$0xf]
          %v2766 = vld [vmem:[%s7 + $0x68] sm:$0xf]
          %v2767 = vld [vmem:[%s7 + $0x6c] sm:$0xf]
          %v2768 = vld [vmem:[%s7 + $0x70] sm:$0xf]
          %v2769 = vld [vmem:[%s7 + $0x74] sm:$0xf]
          %v2770 = vld [vmem:[%s7 + $0x78] sm:$0xf]
          %v2771 = vld [vmem:[%s7 + $0x7c] sm:$0xf]
          %v2772 = vld [vmem:[%s7 + $0x80] sm:$0xf]
          %v2773 = vld [vmem:[%s7 + $0x84] sm:$0xf]
          %v2774 = vld [vmem:[%s7 + $0x88] sm:$0xf]
          %v2775 = vld [vmem:[%s7 + $0x8c] sm:$0xf]
          %v2776 = vld [vmem:[%s7 + $0x90] sm:$0xf]
          %v2777 = vld [vmem:[%s7 + $0x94] sm:$0xf]
          %v2778 = vld [vmem:[%s7 + $0x98] sm:$0xf]
          %v2779 = vld [vmem:[%s7 + $0x9c] sm:$0xf]
          %v2780 = vld [vmem:[%s7 + $0xa0] sm:$0xf]
          %v2781 = vld [vmem:[%s7 + $0xa4] sm:$0xf]
          %v2782 = vld [vmem:[%s7 + $0xa8] sm:$0xf]
          %v2783 = vld [vmem:[%s7 + $0xac] sm:$0xf]
          %v2784 = vld [vmem:[%s7 + $0xb0] sm:$0xf]
          %v2785 = vld [vmem:[%s7 + $0xb4] sm:$0xf]
          %v2786 = vld [vmem:[%s7 + $0xb8] sm:$0xf]
          %v2787 = vld [vmem:[%s7 + $0xbc] sm:$0xf]
          %v2788 = vld [vmem:[%s7 + $0xc0] sm:$0xf]
          %v2789 = vld [vmem:[%s7 + $0xc4] sm:$0xf]
          %v2790 = vld [vmem:[%s7 + $0xc8] sm:$0xf]
          %v2791 = vld [vmem:[%s7 + $0xcc] sm:$0xf]
          %v2792 = vld [vmem:[%s7 + $0xd0] sm:$0xf]
          %v2793 = vld [vmem:[%s7 + $0xd4] sm:$0xf]
          %v2794 = vld [vmem:[%s7 + $0xd8] sm:$0xf]
          %v2795 = vld [vmem:[%s7 + $0xdc] sm:$0xf]
          %v2796 = vld [vmem:[%s7 + $0xe0] sm:$0xf]
          %v2797 = vld [vmem:[%s7 + $0xe4] sm:$0xf]
          %v2798 = vld [vmem:[%s7 + $0xe8] sm:$0xf]
          %v2799 = vld [vmem:[%s7 + $0xec] sm:$0xf]
          %v2800 = vld [vmem:[%s7 + $0xf0] sm:$0xf]
          %v2801 = vld [vmem:[%s7 + $0xf4] sm:$0xf]
          %v2802 = vld [vmem:[%s7 + $0xf8] sm:$0xf]
          %v2803 = vld [vmem:[%s7 + $0xfc] sm:$0xf]
          %v2804 = vld [vmem:[%s7 + $0x100] sm:$0xf]
          %v2805 = vld [vmem:[%s7 + $0x104] sm:$0xf]
          %v2806 = vld [vmem:[%s7 + $0x108] sm:$0xf]
          %v2807 = vld [vmem:[%s7 + $0x10c] sm:$0xf]
          %v2808 = vld [vmem:[%s7 + $0x110] sm:$0xf]
          %v2809 = vld [vmem:[%s7 + $0x114] sm:$0xf]
          %v2810 = vld [vmem:[%s7 + $0x118] sm:$0xf]
          %v2811 = vld [vmem:[%s7 + $0x11c] sm:$0xf]
          %v2812 = vld [vmem:[%s7 + $0x120] sm:$0xf]
          %v2813 = vld [vmem:[%s7 + $0x124] sm:$0xf]
          %v2814 = vld [vmem:[%s7 + $0x128] sm:$0xf]
          %v2815 = vld [vmem:[%s7 + $0x12c] sm:$0xf]
          %v2816 = vld [vmem:[%s7 + $0x130] sm:$0xf]
          %v2817 = vld [vmem:[%s7 + $0x134] sm:$0xf]
          %v2818 = vld [vmem:[%s7 + $0x138] sm:$0xf]
          %v2819 = vld [vmem:[%s7 + $0x13c] sm:$0xf]
          %v2820 = vld [vmem:[%s7 + $0x140] sm:$0xf]
          %v2821 = vld [vmem:[%s7 + $0x144] sm:$0xf]
          %v2822 = vld [vmem:[%s7 + $0x148] sm:$0xf]
          %v2823 = vld [vmem:[%s7 + $0x14c] sm:$0xf]
          %v2824 = vld [vmem:[%s7 + $0x150] sm:$0xf]
          %v2825 = vld [vmem:[%s7 + $0x154] sm:$0xf]
          %v2826 = vld [vmem:[%s7 + $0x158] sm:$0xf]
          %v2827 = vld [vmem:[%s7 + $0x15c] sm:$0xf]
          %v2828 = vld [vmem:[%s7 + $0x160] sm:$0xf]
          %v2829 = vld [vmem:[%s7 + $0x164] sm:$0xf]
          %v2830 = vld [vmem:[%s7 + $0x168] sm:$0xf]
          %v2831 = vld [vmem:[%s7 + $0x16c] sm:$0xf]
          %v2832 = vld [vmem:[%s7 + $0x170] sm:$0xf]
          %v2833 = vld [vmem:[%s7 + $0x174] sm:$0xf]
          %v2834 = vld [vmem:[%s7 + $0x178] sm:$0xf]
          %v2835 = vld [vmem:[%s7 + $0x17c] sm:$0xf]
          %v2836 = vld [vmem:[%s7 + $0x180] sm:$0xf]
          %v2837 = vld [vmem:[%s7 + $0x184] sm:$0xf]
          %v2838 = vld [vmem:[%s7 + $0x188] sm:$0xf]
          %v2839 = vld [vmem:[%s7 + $0x18c] sm:$0xf]
          %v2840 = vld [vmem:[%s7 + $0x190] sm:$0xf]
          %v2841 = vld [vmem:[%s7 + $0x194] sm:$0xf]
          %v2842 = vld [vmem:[%s7 + $0x198] sm:$0xf]
          %v2843 = vld [vmem:[%s7 + $0x19c] sm:$0xf]
          %v2844 = vld [vmem:[%s7 + $0x1a0] sm:$0xf]
          %v2845 = vld [vmem:[%s7 + $0x1a4] sm:$0xf]
          %v2846 = vld [vmem:[%s7 + $0x1a8] sm:$0xf]
          %v2847 = vld [vmem:[%s7 + $0x1ac] sm:$0xf]
          %v2848 = vld [vmem:[%s7 + $0x1b0] sm:$0xf]
          %v2849 = vld [vmem:[%s7 + $0x1b4] sm:$0xf]
          %v2850 = vld [vmem:[%s7 + $0x1b8] sm:$0xf]
          %v2851 = vld [vmem:[%s7 + $0x1bc] sm:$0xf]
          %v2852 = vld [vmem:[%s7 + $0x1c0] sm:$0xf]
          %v2853 = vld [vmem:[%s7 + $0x1c4] sm:$0xf]
          %v2854 = vld [vmem:[%s7 + $0x1c8] sm:$0xf]
          %v2855 = vld [vmem:[%s7 + $0x1cc] sm:$0xf]
          %v2856 = vld [vmem:[%s7 + $0x1d0] sm:$0xf]
          %v2857 = vld [vmem:[%s7 + $0x1d4] sm:$0xf]
          %v2858 = vld [vmem:[%s7 + $0x1d8] sm:$0xf]
          %v2859 = vld [vmem:[%s7 + $0x1dc] sm:$0xf]
          %v2860 = vld [vmem:[%s7 + $0x1e0] sm:$0xf]
          %v2861 = vld [vmem:[%s7 + $0x1e4] sm:$0xf]
          %v2862 = vld [vmem:[%s7 + $0x1e8] sm:$0xf]
          %v2863 = vld [vmem:[%s7 + $0x1ec] sm:$0xf]
          %v2864 = vld [vmem:[%s7 + $0x1f0] sm:$0xf]
          %v2865 = vld [vmem:[%s7 + $0x1f4] sm:$0xf]
          %v2866 = vld [vmem:[%s7 + $0x1f8] sm:$0xf]
          %v2867 = vld [vmem:[%s7 + $0x1fc] sm:$0xf]
          %v2868 = vld [vmem:[%s8] sm:$0x1]
          %v2997 = vunpack.c.l.b16 %v2740
          %v2998 = vunpack.c.l.b16 %v2741
          %v2999 = vunpack.c.l.b16 %v2742
          %v3000 = vunpack.c.l.b16 %v2743
          %v3001 = vunpack.c.l.b16 %v2744
          %v3002 = vunpack.c.l.b16 %v2745
          %v3003 = vunpack.c.l.b16 %v2746
          %v3004 = vunpack.c.l.b16 %v2747
          %v3005 = vunpack.c.l.b16 %v2748
          %v3006 = vunpack.c.l.b16 %v2749
          %v3007 = vunpack.c.l.b16 %v2750
          %v3008 = vunpack.c.l.b16 %v2751
          %v3009 = vunpack.c.l.b16 %v2752
          %v3010 = vunpack.c.l.b16 %v2753
          %v3011 = vunpack.c.l.b16 %v2754
          %v3012 = vunpack.c.l.b16 %v2755
          %v3013 = vunpack.c.l.b16 %v2756
          %v3014 = vunpack.c.l.b16 %v2757
          %v3015 = vunpack.c.l.b16 %v2758
          %v3016 = vunpack.c.l.b16 %v2759
          %v3017 = vunpack.c.l.b16 %v2760
          %v3018 = vunpack.c.l.b16 %v2761
          %v3019 = vunpack.c.l.b16 %v2762
          %v3020 = vunpack.c.l.b16 %v2763
          %v3021 = vunpack.c.l.b16 %v2764
          %v3022 = vunpack.c.l.b16 %v2765
          %v3023 = vunpack.c.l.b16 %v2766
          %v3024 = vunpack.c.l.b16 %v2767
          %v3025 = vunpack.c.l.b16 %v2768
          %v3026 = vunpack.c.l.b16 %v2769
          %v3027 = vunpack.c.l.b16 %v2770
          %v3028 = vunpack.c.l.b16 %v2771
          %v3029 = vunpack.c.l.b16 %v2772
          %v3030 = vunpack.c.l.b16 %v2773
          %v3031 = vunpack.c.l.b16 %v2774
          %v3032 = vunpack.c.l.b16 %v2775
          %v3033 = vunpack.c.l.b16 %v2776
          %v3034 = vunpack.c.l.b16 %v2777
          %v3035 = vunpack.c.l.b16 %v2778
          %v3036 = vunpack.c.l.b16 %v2779
          %v3037 = vunpack.c.l.b16 %v2780
          %v3038 = vunpack.c.l.b16 %v2781
          %v3039 = vunpack.c.l.b16 %v2782
          %v3040 = vunpack.c.l.b16 %v2783
          %v3041 = vunpack.c.l.b16 %v2784
          %v3042 = vunpack.c.l.b16 %v2785
          %v3043 = vunpack.c.l.b16 %v2786
          %v3044 = vunpack.c.l.b16 %v2787
          %v3045 = vunpack.c.l.b16 %v2788
          %v3046 = vunpack.c.l.b16 %v2789
          %v3047 = vunpack.c.l.b16 %v2790
          %v3048 = vunpack.c.l.b16 %v2791
          %v3049 = vunpack.c.l.b16 %v2792
          %v3050 = vunpack.c.l.b16 %v2793
          %v3051 = vunpack.c.l.b16 %v2794
          %v3052 = vunpack.c.l.b16 %v2795
          %v3053 = vunpack.c.l.b16 %v2796
          %v3054 = vunpack.c.l.b16 %v2797
          %v3055 = vunpack.c.l.b16 %v2798
          %v3056 = vunpack.c.l.b16 %v2799
          %v3057 = vunpack.c.l.b16 %v2800
          %v3058 = vunpack.c.l.b16 %v2801
          %v3059 = vunpack.c.l.b16 %v2802
          %v3060 = vunpack.c.l.b16 %v2803
          %v3061 = vunpack.c.l.b16 %v2804
          %v3062 = vunpack.c.l.b16 %v2805
          %v3063 = vunpack.c.l.b16 %v2806
          %v3064 = vunpack.c.l.b16 %v2807
          %v3065 = vunpack.c.l.b16 %v2808
          %v3066 = vunpack.c.l.b16 %v2809
          %v3067 = vunpack.c.l.b16 %v2810
          %v3068 = vunpack.c.l.b16 %v2811
          %v3069 = vunpack.c.l.b16 %v2812
          %v3070 = vunpack.c.l.b16 %v2813
          %v3071 = vunpack.c.l.b16 %v2814
          %v3072 = vunpack.c.l.b16 %v2815
          %v3073 = vunpack.c.l.b16 %v2816
          %v3074 = vunpack.c.l.b16 %v2817
          %v3075 = vunpack.c.l.b16 %v2818
          %v3076 = vunpack.c.l.b16 %v2819
          %v3077 = vunpack.c.l.b16 %v2820
          %v3078 = vunpack.c.l.b16 %v2821
          %v3079 = vunpack.c.l.b16 %v2822
          %v3080 = vunpack.c.l.b16 %v2823
          %v3081 = vunpack.c.l.b16 %v2824
          %v3082 = vunpack.c.l.b16 %v2825
          %v3083 = vunpack.c.l.b16 %v2826
          %v3084 = vunpack.c.l.b16 %v2827
          %v3085 = vunpack.c.l.b16 %v2828
          %v3086 = vunpack.c.l.b16 %v2829
          %v3087 = vunpack.c.l.b16 %v2830
          %v3088 = vunpack.c.l.b16 %v2831
          %v3089 = vunpack.c.l.b16 %v2832
          %v3090 = vunpack.c.l.b16 %v2833
          %v3091 = vunpack.c.l.b16 %v2834
          %v3092 = vunpack.c.l.b16 %v2835
          %v3093 = vunpack.c.l.b16 %v2836
          %v3094 = vunpack.c.l.b16 %v2837
          %v3095 = vunpack.c.l.b16 %v2838
          %v3096 = vunpack.c.l.b16 %v2839
          %v3097 = vunpack.c.l.b16 %v2840
          %v3098 = vunpack.c.l.b16 %v2841
          %v3099 = vunpack.c.l.b16 %v2842
          %v3100 = vunpack.c.l.b16 %v2843
          %v3101 = vunpack.c.l.b16 %v2844
          %v3102 = vunpack.c.l.b16 %v2845
          %v3103 = vunpack.c.l.b16 %v2846
          %v3104 = vunpack.c.l.b16 %v2847
          %v3105 = vunpack.c.l.b16 %v2848
          %v3106 = vunpack.c.l.b16 %v2849
          %v3107 = vunpack.c.l.b16 %v2850
          %v3108 = vunpack.c.l.b16 %v2851
          %v3109 = vunpack.c.l.b16 %v2852
          %v3110 = vunpack.c.l.b16 %v2853
          %v3111 = vunpack.c.l.b16 %v2854
          %v3112 = vunpack.c.l.b16 %v2855
          %v3113 = vunpack.c.l.b16 %v2856
          %v3114 = vunpack.c.l.b16 %v2857
          %v3115 = vunpack.c.l.b16 %v2858
          %v3116 = vunpack.c.l.b16 %v2859
          %v3117 = vunpack.c.l.b16 %v2860
          %v3118 = vunpack.c.l.b16 %v2861
          %v3119 = vunpack.c.l.b16 %v2862
          %v3120 = vunpack.c.l.b16 %v2863
          %v3121 = vunpack.c.l.b16 %v2864
          %v3122 = vunpack.c.l.b16 %v2865
          %v3123 = vunpack.c.l.b16 %v2866
          %v3124 = vunpack.c.l.b16 %v2867
          %v3125 = vpack.c.b16 %v2998, %v2997
          %v3126 = vpack.c.b16 %v3000, %v2999
          %v3127 = vpack.c.b16 %v3002, %v3001
          %v3128 = vpack.c.b16 %v3004, %v3003
          %v3129 = vpack.c.b16 %v3006, %v3005
          %v3130 = vpack.c.b16 %v3008, %v3007
          %v3131 = vpack.c.b16 %v3010, %v3009
          %v3132 = vpack.c.b16 %v3012, %v3011
          %v3133 = vpack.c.b16 %v3014, %v3013
          %v3134 = vpack.c.b16 %v3016, %v3015
          %v3135 = vpack.c.b16 %v3018, %v3017
          %v3136 = vpack.c.b16 %v3020, %v3019
          %v3137 = vpack.c.b16 %v3022, %v3021
          %v3138 = vpack.c.b16 %v3024, %v3023
          %v3139 = vpack.c.b16 %v3026, %v3025
          %v3140 = vpack.c.b16 %v3028, %v3027
          %v3141 = vpack.c.b16 %v3030, %v3029
          %v3142 = vpack.c.b16 %v3032, %v3031
          %v3143 = vpack.c.b16 %v3034, %v3033
          %v3144 = vpack.c.b16 %v3036, %v3035
          %v3145 = vpack.c.b16 %v3038, %v3037
          %v3146 = vpack.c.b16 %v3040, %v3039
          %v3147 = vpack.c.b16 %v3042, %v3041
          %v3148 = vpack.c.b16 %v3044, %v3043
          %v3149 = vpack.c.b16 %v3046, %v3045
          %v3150 = vpack.c.b16 %v3048, %v3047
          %v3151 = vpack.c.b16 %v3050, %v3049
          %v3152 = vpack.c.b16 %v3052, %v3051
          %v3153 = vpack.c.b16 %v3054, %v3053
          %v3154 = vpack.c.b16 %v3056, %v3055
          %v3155 = vpack.c.b16 %v3058, %v3057
          %v3156 = vpack.c.b16 %v3060, %v3059
          %v3157 = vpack.c.b16 %v3062, %v3061
          %v3158 = vpack.c.b16 %v3064, %v3063
          %v3159 = vpack.c.b16 %v3066, %v3065
          %v3160 = vpack.c.b16 %v3068, %v3067
          %v3161 = vpack.c.b16 %v3070, %v3069
          %v3162 = vpack.c.b16 %v3072, %v3071
          %v3163 = vpack.c.b16 %v3074, %v3073
          %v3164 = vpack.c.b16 %v3076, %v3075
          %v3165 = vpack.c.b16 %v3078, %v3077
          %v3166 = vpack.c.b16 %v3080, %v3079
          %v3167 = vpack.c.b16 %v3082, %v3081
          %v3168 = vpack.c.b16 %v3084, %v3083
          %v3169 = vpack.c.b16 %v3086, %v3085
          %v3170 = vpack.c.b16 %v3088, %v3087
          %v3171 = vpack.c.b16 %v3090, %v3089
          %v3172 = vpack.c.b16 %v3092, %v3091
          %v3173 = vpack.c.b16 %v3094, %v3093
          %v3174 = vpack.c.b16 %v3096, %v3095
          %v3175 = vpack.c.b16 %v3098, %v3097
          %v3176 = vpack.c.b16 %v3100, %v3099
          %v3177 = vpack.c.b16 %v3102, %v3101
          %v3178 = vpack.c.b16 %v3104, %v3103
          %v3179 = vpack.c.b16 %v3106, %v3105
          %v3180 = vpack.c.b16 %v3108, %v3107
          %v3181 = vpack.c.b16 %v3110, %v3109
          %v3182 = vpack.c.b16 %v3112, %v3111
          %v3183 = vpack.c.b16 %v3114, %v3113
          %v3184 = vpack.c.b16 %v3116, %v3115
          %v3185 = vpack.c.b16 %v3118, %v3117
          %v3186 = vpack.c.b16 %v3120, %v3119
          %v3187 = vpack.c.b16 %v3122, %v3121
          %v3188 = vpack.c.b16 %v3124, %v3123
          %3253 = vmatprep.subr.bf16.mxu0 0
          %3254 = vmatpush1.bf16.msra.mxu0 %v3132
          %3255 = vmatprep.subr.bf16.mxu0 0
          %3256 = vmatpush1.bf16.msra.mxu0 %v3131
          %3257 = vmatprep.subr.bf16.mxu0 0
          %3258 = vmatpush1.bf16.msra.mxu0 %v3130
          %3259 = vmatprep.subr.bf16.mxu0 0
          %3260 = vmatpush1.bf16.msra.mxu0 %v3129
          %3261 = vmatprep.subr.bf16.mxu0 0
          %3262 = vmatpush1.bf16.msra.mxu0 %v3128
          %3263 = vmatprep.subr.bf16.mxu0 0
          %3264 = vmatpush1.bf16.msra.mxu0 %v3127
          %3265 = vmatprep.subr.bf16.mxu0 0
          %3266 = vmatpush1.bf16.msra.mxu0 %v3126
          %3267 = vmatprep.subr.bf16.mxu0 0
          %3268 = vmatpush1.bf16.msra.mxu0 %v3125
          %3269 = vmatprep.subr.bf16.mxu0 0
          %3270 = vmatpush2.bf16.msra.mxu0 %v3140
          %3271 = vmatprep.subr.bf16.mxu0 0
          %3272 = vmatpush2.bf16.msra.mxu0 %v3139
          %3273 = vmatprep.subr.bf16.mxu0 0
          %3274 = vmatpush2.bf16.msra.mxu0 %v3138
          %3275 = vmatprep.subr.bf16.mxu0 0
          %3276 = vmatpush2.bf16.msra.mxu0 %v3137
          %3277 = vmatprep.subr.bf16.mxu0 0
          %3278 = vmatpush2.bf16.msra.mxu0 %v3136
          %3279 = vmatprep.subr.bf16.mxu0 0
          %3280 = vmatpush2.bf16.msra.mxu0 %v3135
          %3281 = vmatprep.subr.bf16.mxu0 0
          %3282 = vmatpush2.bf16.msra.mxu0 %v3134
          %3283 = vmatprep.subr.bf16.mxu0 0
          %3284 = vmatpush2.bf16.msra.mxu0 %v3133
          %3285 = vmatprep.mubr.bf16.mxu0 %v2733
          %3286 = vmatmul.mubr.bf16.gmra.mxu0 %v2732
          %v3287 = vpop.f32.mrf.mxu0
          %v3288 = vadd.f32 %v2868, %v3287
          %v3289 = vpop.f32.mrf.mxu0
          %v3290 = vpop.f32.mrf.mxu0
          %v3291 = vpop.f32.mrf.mxu0
          %3292 = vdwg.mxu0
          %3293 = vmatprep.subr.bf16.mxu0 0
          %3294 = vmatpush1.bf16.msra.mxu0 %v3148
          %3295 = vmatprep.subr.bf16.mxu0 0
          %3296 = vmatpush1.bf16.msra.mxu0 %v3147
          %3297 = vmatprep.subr.bf16.mxu0 0
          %3298 = vmatpush1.bf16.msra.mxu0 %v3146
          %3299 = vmatprep.subr.bf16.mxu0 0
          %3300 = vmatpush1.bf16.msra.mxu0 %v3145
          %3301 = vmatprep.subr.bf16.mxu0 0
          %3302 = vmatpush1.bf16.msra.mxu0 %v3144
          %3303 = vmatprep.subr.bf16.mxu0 0
          %3304 = vmatpush1.bf16.msra.mxu0 %v3143
          %3305 = vmatprep.subr.bf16.mxu0 0
          %3306 = vmatpush1.bf16.msra.mxu0 %v3142
          %3307 = vmatprep.subr.bf16.mxu0 0
          %3308 = vmatpush1.bf16.msra.mxu0 %v3141
          %3309 = vmatprep.subr.bf16.mxu0 0
          %3310 = vmatpush2.bf16.msra.mxu0 %v3156
          %3311 = vmatprep.subr.bf16.mxu0 0
          %3312 = vmatpush2.bf16.msra.mxu0 %v3155
          %3313 = vmatprep.subr.bf16.mxu0 0
          %3314 = vmatpush2.bf16.msra.mxu0 %v3154
          %3315 = vmatprep.subr.bf16.mxu0 0
          %3316 = vmatpush2.bf16.msra.mxu0 %v3153
          %3317 = vmatprep.subr.bf16.mxu0 0
          %3318 = vmatpush2.bf16.msra.mxu0 %v3152
          %3319 = vmatprep.subr.bf16.mxu0 0
          %3320 = vmatpush2.bf16.msra.mxu0 %v3151
          %3321 = vmatprep.subr.bf16.mxu0 0
          %3322 = vmatpush2.bf16.msra.mxu0 %v3150
          %3323 = vmatprep.subr.bf16.mxu0 0
          %3324 = vmatpush2.bf16.msra.mxu0 %v3149
          %3325 = vmatprep.mubr.bf16.mxu0 %v2735
          %3326 = vmatmul.mubr.bf16.gmra.mxu0 %v2734
          %v3327 = vpop.f32.mrf.mxu0
          %v3328 = vadd.f32 %v3288, %v3327
          %v3329 = vpop.f32.mrf.mxu0
          %v3330 = vpop.f32.mrf.mxu0
          %v3331 = vpop.f32.mrf.mxu0
          %3332 = vdwg.mxu0
          %3333 = vmatprep.subr.bf16.mxu0 0
          %3334 = vmatpush1.bf16.msra.mxu0 %v3164
          %3335 = vmatprep.subr.bf16.mxu0 0
          %3336 = vmatpush1.bf16.msra.mxu0 %v3163
          %3337 = vmatprep.subr.bf16.mxu0 0
          %3338 = vmatpush1.bf16.msra.mxu0 %v3162
          %3339 = vmatprep.subr.bf16.mxu0 0
          %3340 = vmatpush1.bf16.msra.mxu0 %v3161
          %3341 = vmatprep.subr.bf16.mxu0 0
          %3342 = vmatpush1.bf16.msra.mxu0 %v3160
          %3343 = vmatprep.subr.bf16.mxu0 0
          %3344 = vmatpush1.bf16.msra.mxu0 %v3159
          %3345 = vmatprep.subr.bf16.mxu0 0
          %3346 = vmatpush1.bf16.msra.mxu0 %v3158
          %3347 = vmatprep.subr.bf16.mxu0 0
          %3348 = vmatpush1.bf16.msra.mxu0 %v3157
          %3349 = vmatprep.subr.bf16.mxu0 0
          %3350 = vmatpush2.bf16.msra.mxu0 %v3172
          %3351 = vmatprep.subr.bf16.mxu0 0
          %3352 = vmatpush2.bf16.msra.mxu0 %v3171
          %3353 = vmatprep.subr.bf16.mxu0 0
          %3354 = vmatpush2.bf16.msra.mxu0 %v3170
          %3355 = vmatprep.subr.bf16.mxu0 0
          %3356 = vmatpush2.bf16.msra.mxu0 %v3169
          %3357 = vmatprep.subr.bf16.mxu0 0
          %3358 = vmatpush2.bf16.msra.mxu0 %v3168
          %3359 = vmatprep.subr.bf16.mxu0 0
          %3360 = vmatpush2.bf16.msra.mxu0 %v3167
          %3361 = vmatprep.subr.bf16.mxu0 0
          %3362 = vmatpush2.bf16.msra.mxu0 %v3166
          %3363 = vmatprep.subr.bf16.mxu0 0
          %3364 = vmatpush2.bf16.msra.mxu0 %v3165
          %3365 = vmatprep.mubr.bf16.mxu0 %v2737
          %3366 = vmatmul.mubr.bf16.gmra.mxu0 %v2736
          %v3367 = vpop.f32.mrf.mxu0
          %v3368 = vadd.f32 %v3328, %v3367
          %v3369 = vpop.f32.mrf.mxu0
          %v3370 = vpop.f32.mrf.mxu0
          %v3371 = vpop.f32.mrf.mxu0
          %3372 = vdwg.mxu0
          %3373 = vmatprep.subr.bf16.mxu0 0
          %3374 = vmatpush1.bf16.msra.mxu0 %v3180
          %3375 = vmatprep.subr.bf16.mxu0 0
          %3376 = vmatpush1.bf16.msra.mxu0 %v3179
          %3377 = vmatprep.subr.bf16.mxu0 0
          %3378 = vmatpush1.bf16.msra.mxu0 %v3178
          %3379 = vmatprep.subr.bf16.mxu0 0
          %3380 = vmatpush1.bf16.msra.mxu0 %v3177
          %3381 = vmatprep.subr.bf16.mxu0 0
          %3382 = vmatpush1.bf16.msra.mxu0 %v3176
          %3383 = vmatprep.subr.bf16.mxu0 0
          %3384 = vmatpush1.bf16.msra.mxu0 %v3175
          %3385 = vmatprep.subr.bf16.mxu0 0
          %3386 = vmatpush1.bf16.msra.mxu0 %v3174
          %3387 = vmatprep.subr.bf16.mxu0 0
          %3388 = vmatpush1.bf16.msra.mxu0 %v3173
          %3389 = vmatprep.subr.bf16.mxu0 0
          %3390 = vmatpush2.bf16.msra.mxu0 %v3188
          %3391 = vmatprep.subr.bf16.mxu0 0
          %3392 = vmatpush2.bf16.msra.mxu0 %v3187
          %3393 = vmatprep.subr.bf16.mxu0 0
          %3394 = vmatpush2.bf16.msra.mxu0 %v3186
          %3395 = vmatprep.subr.bf16.mxu0 0
          %3396 = vmatpush2.bf16.msra.mxu0 %v3185
          %3397 = vmatprep.subr.bf16.mxu0 0
          %3398 = vmatpush2.bf16.msra.mxu0 %v3184
          %3399 = vmatprep.subr.bf16.mxu0 0
          %3400 = vmatpush2.bf16.msra.mxu0 %v3183
          %3401 = vmatprep.subr.bf16.mxu0 0
          %3402 = vmatpush2.bf16.msra.mxu0 %v3182
          %3403 = vmatprep.subr.bf16.mxu0 0
          %3404 = vmatpush2.bf16.msra.mxu0 %v3181
          %3405 = vmatprep.mubr.bf16.mxu0 %v2739
          %3406 = vmatmul.mubr.bf16.gmra.mxu0 %v2738
          %v3407 = vpop.f32.mrf.mxu0
          %v3408 = vadd.f32 %v3368, %v3407
          %v3409 = vpop.f32.mrf.mxu0
          %v3410 = vpop.f32.mrf.mxu0
          %v3411 = vpop.f32.mrf.mxu0
          %3412 = vdwg.mxu0
          %vm3413 = vcmask 1040384
          %v3414 = vsel %vm3413, %v3408, -inf
          %3415 = vmax.xlane.f32.xlu0 %v3414
          %v3416 = vpop.xlane.xlu0 %3415
          %v3417 = vsub.f32 %v3408, %v3416
          %v3418 = vmul.f32 %v3417, 1.442695
          %v3419 = vpow.pop %v3418
          %v3420 = vsel %vm3413, %v3419, 0.0
          %3421 = vadd.xlane.f32.xlu0 %v3420
          %v3422 = vpop.xlane.xlu0 %3421
          %v3423 = vrcp.pop %v3422
          %v3424 = vmul.f32 %v3419, %v3423
          %3425 = vst [vmem:[%s347] sm:$0x1] %v3424
        $region64: #{model_out_forward.1} parent=55 // pred_fallthru
          _
        %s3426 = sand.u32 %s239, 1
        %s3427 = scalar_lea.sflag [#allocation4], %s3426
        %s3428 = sand.u32 %s239, 1
        %s3429 = scalar_lea.vmem [#allocation3], %s3428
        // Predicated region
        $region65: #{model_out_forward.1} parent=55 // pred_check
          %p3430 = pneg %p249
        $region66: #{model_out_forward.1} parent=55 // pred_check_branch
          %3432 = sbr.rel (%p3430) target = $region68
        $region67: #{model_out_forward.1} parent=55 // pred_region
          %s3434 = ssub.s32 16, 16
          %3435 = vsyncadd %s3427, %s3434
          %s3436 = smul.addr %s27, 16
          %s3437 = scalar_lea.hbm %s9, %s3436
          %s3439 = sshll.u32 %s3429, 4
          %s3440 = int_to_ptr.vmem [resolvable:$true] %s3439
          %3442 = dma.vmem_to_hbm [thread:$0]  %s3440, 16, %s3437, %s3427
        $region68: #{model_out_forward.1} parent=55 // pred_fallthru
          _
      $region56: #{model_out_forward.1} parent=5 // pred_fallthru
        _
      %p3443 = scmp.le.s32.totalorder 2, %s18
      // Predicated region
      $region69: #{model_out_forward.1} parent=5 // pred_check
        %p3444 = pneg %p3443
      $region70: #{model_out_forward.1} parent=5 // pred_check_branch
        %3446 = sbr.rel (%p3444) target = $region72
      $region71: #{model_out_forward.1} parent=5 // pred_region
        %s3447 = ssub.s32 %s18, 2
        // Predicated region
        $region73: #{model_out_forward.1} parent=71 // pred_check
          %p3448 = pneg %p255
        $region74: #{model_out_forward.1} parent=71 // pred_check_branch
          %3450 = sbr.rel (%p3448) target = $region76
        $region75: #{model_out_forward.1} parent=71 // pred_region
          %s3451 = sand.u32 %s240, 1
          %s3452 = scalar_lea.sflag [#allocation4], %s3451
          %s3453 = sand.u32 %s240, 1
          %s3454 = scalar_lea.vmem [#allocation3], %s3453
          %3455 = dma.done %s3452, 16
        $region76: #{model_out_forward.1} parent=71 // pred_fallthru
          _
      $region72: #{model_out_forward.1} parent=5 // pred_fallthru
        _
    $region6: #{model_out_forward.1} parent=1 // loop_footer
      %s22 = sadd.s32 1, %s18
    $region7: #{model_out_forward.1} parent=1 // loop_footer_branch
      %17 = sbr.rel target = $region3
    $region8: #{model_out_forward.1} parent=1 // loop_exit
      _
    %3456 = vsyncpa [#allocation4], 1
    %s3457 = scalar_lea.sflag [#allocation4], 1
    %3458 = vsyncpa %s3457, 1

</llo_original>
